<compile_context>
chip_gen: v7x
topology: tpu7x:2x2x1
jax: 0.10.0
libtpu: 0.0.40
codegen_flags: <defaults>
</compile_context>

<pallas_src>
import functools

import jax
import jax.numpy as jnp
from jax.experimental import pallas as pl
from jax.experimental.pallas import tpu as pltpu

# Set to jnp.bfloat16 for production layers (v6e/v7x): ~2x MXU rate, f32 accum.
_MXU_DTYPE = jnp.float32


# ----------------------------------------------------------------------------
# Conv (+ optional fused input BN+ReLU) + BN partial-stats kernel
# ----------------------------------------------------------------------------
def _conv_stats_kernel(*refs, k, kstride, ho, wo, pad_out, fuse_in):
    """One batch image: KxK conv as a single MXU contraction + BN partial stats.

    refs (fuse_in=False): x, w, y, st
    refs (fuse_in=True):  x, w, scale, shift, y, st
      x : (P, Hph, Wph, Cin)  stride-phase-split (padded) input for this image
      w : (K*K*Cin, Cout)     flattened weights (resident)
      scale/shift : (1, Cin)  fused relu(bn(.)) applied to the loaded tile
      y : (1, Ho[+2], Wo[+2], Cout)  conv output (optionally with zero pad ring)
      st: (1, 2, Cout)        per-image [sum, sum-of-squares] over Ho*Wo
    """
    if fuse_in:
        x_ref, w_ref, s_ref, b_ref, y_ref, st_ref = refs
    else:
        x_ref, w_ref, y_ref, st_ref = refs
    cin = x_ref.shape[-1]
    cout = w_ref.shape[-1]

    if fuse_in:
        # relu(bn1(.)) fused into the input load; the 1-pixel pad ring must stay
        # zero (it is zero *pre*-BN), so mask it back to zero after the affine.
        xa = x_ref[0]                                   # (Hp, Wp, Cin); P == 1
        hp, wp = xa.shape[0], xa.shape[1]
        row = jax.lax.broadcasted_iota(jnp.int32, (hp, wp, cin), 0)
        col = jax.lax.broadcasted_iota(jnp.int32, (hp, wp, cin), 1)
        interior = (row >= 1) & (row < hp - 1) & (col >= 1) & (col < wp - 1)
        s = s_ref[...].reshape(1, 1, cin)
        b = b_ref[...].reshape(1, 1, cin)
        xa = jnp.where(interior, jnp.maximum(xa * s + b, 0.0), 0.0)

    # Collapse the K*K taps into one contraction: concat shifted patches on the
    # channel (lane) axis, single reshape, single MXU dot.
    taps = []
    for kh in range(k):
        for kw in range(k):
            ph = (kh % kstride) * kstride + (kw % kstride)   # stride phase
            oh = kh // kstride                               # row offset in phase
            ow = kw // kstride                               # col offset in phase
            if fuse_in:
                taps.append(xa[oh:oh + ho, ow:ow + wo, :])
            else:
                taps.append(x_ref[ph, oh:oh + ho, ow:ow + wo, :])
    lhs = taps[0] if len(taps) == 1 else jnp.concatenate(taps, axis=-1)
    acc = jnp.dot(lhs.reshape(ho * wo, k * k * cin).astype(_MXU_DTYPE),
                  w_ref[...].astype(_MXU_DTYPE),
                  preferred_element_type=jnp.float32)        # (Ho*Wo, Cout)

    # BN partial statistics while the tile is still on chip.
    # (One-pass E[x^2]-E[x]^2 variance; fine at this scale, center for real data.)
    st_ref[0, 0:1, :] = jnp.sum(acc, axis=0, keepdims=True)
    st_ref[0, 1:2, :] = jnp.sum(acc * acc, axis=0, keepdims=True)

    y_img = acc.reshape(ho, wo, cout)
    if pad_out:
        # Write the output WITH its zero pad ring so the consumer conv never
        # needs a wrapper-side jnp.pad (saves one HBM read+write pass).
        y_ref[...] = jnp.zeros(y_ref.shape, y_ref.dtype)
        y_ref[0, 1:1 + ho, 1:1 + wo, :] = y_img
    else:
        y_ref[0] = y_img


def conv2d_bn_stats(x_nhwc, w_oihw, stride, padding, *,
                    in_scale=None, in_shift=None,
                    input_prepadded=False, pad_output=False):
    """Conv2d (no bias, OIHW weights) + per-channel sum / sum-of-squares.

    in_scale/in_shift: fuse relu(x*scale+shift) into the input load (input must
      carry a 1-pixel zero pad ring; used for bn1+relu feeding conv2).
    input_prepadded:   input already contains the zero `padding` ring.
    pad_output:        write the output with a 1-pixel zero pad ring.
    Returns (y_nhwc, sum_c, sumsq_c, count).
    """
    n, h, w, cin = x_nhwc.shape
    cout, _, k, _ = w_oihw.shape
    fuse_in = in_scale is not None

    xp = x_nhwc
    if padding and not input_prepadded:
        xp = jnp.pad(xp, ((0, 0), (padding, padding), (padding, padding), (0, 0)))
    ho = (xp.shape[1] - k) // stride + 1
    wo = (xp.shape[2] - k) // stride + 1

    # Arrange the input so every kernel tap is a contiguous in-VMEM window.
    if k == 1:
        # 1x1 conv: only phase (0,0) is read -> pre-subsample, stride 1 in-kernel.
        xph = xp[:, ::stride, ::stride, :][:, :ho, :wo, :]
        nphase, kstride = 1, 1
    elif stride == 1:
        xph = xp
        nphase, kstride = 1, 1
    else:
        # Stride-phase split: phase (a,b)[i,j] = xp[a + s*i, b + s*j].
        hph = ho + (k - 1) // stride
        wph = wo + (k - 1) // stride
        pad_h = max(0, stride * hph - xp.shape[1])
        pad_w = max(0, stride * wph - xp.shape[2])
        if pad_h or pad_w:
            xp = jnp.pad(xp, ((0, 0), (0, pad_h), (0, pad_w), (0, 0)))
        phases = [xp[:, a::stride, b::stride, :][:, :hph, :wph, :]
                  for a in range(stride) for b in range(stride)]
        xph = jnp.stack(phases, axis=1).reshape(n * stride * stride, hph, wph, cin)
        nphase, kstride = stride * stride, stride

    hph2, wph2 = xph.shape[1], xph.shape[2]
    # (O, I, Kh, Kw) -> (Kh, Kw, I, O) -> (K*K*Cin, Cout); matches tap/concat order.
    wflat = jnp.transpose(w_oihw, (2, 3, 1, 0)).reshape(k * k * cin, cout)

    ring = 1 if pad_output else 0
    kern = functools.partial(_conv_stats_kernel, k=k, kstride=kstride,
                             ho=ho, wo=wo, pad_out=pad_output, fuse_in=fuse_in)

    in_specs = [pl.BlockSpec((nphase, hph2, wph2, cin), lambda i: (i, 0, 0, 0)),
                pl.BlockSpec((k * k * cin, cout), lambda i: (0, 0))]
    inputs = [xph, wflat]
    if fuse_in:
        in_specs += [pl.BlockSpec((1, cin), lambda i: (0, 0)),
                     pl.BlockSpec((1, cin), lambda i: (0, 0))]
        inputs += [in_scale.reshape(1, cin), in_shift.reshape(1, cin)]

    y, st = pl.pallas_call(
        kern,
        out_shape=(jax.ShapeDtypeStruct((n, ho + 2 * ring, wo + 2 * ring, cout),
                                        jnp.float32),
                   jax.ShapeDtypeStruct((n, 2, cout), jnp.float32)),
        grid=(n,),
        in_specs=in_specs,
        out_specs=(pl.BlockSpec((1, ho + 2 * ring, wo + 2 * ring, cout),
                                lambda i: (i, 0, 0, 0)),
                   pl.BlockSpec((1, 2, cout), lambda i: (i, 0, 0))),
        compiler_params=pltpu.CompilerParams(dimension_semantics=("parallel",)),
    )(*inputs)

    ssum = jnp.sum(st[:, 0, :], axis=0)
    ssq = jnp.sum(st[:, 1, :], axis=0)
    return y, ssum, ssq, n * ho * wo


def _bn_scale_shift_from_stats(ssum, ssq, count, gamma, beta, eps=1e-5):
    # Training-mode BatchNorm2d: batch mean / biased variance from fused sums.
    mean = ssum / count
    var = jnp.maximum(ssq / count - mean * mean, 0.0)
    scale = gamma * jax.lax.rsqrt(var + eps)
    shift = beta - mean * scale
    return scale, shift


# ----------------------------------------------------------------------------
# Fused lane-dense elementwise epilogues (bn2 + residual (+bn) + relu)
# ----------------------------------------------------------------------------
def _bn_add_relu_kernel(y_ref, r_ref, s_ref, b_ref, o_ref):
    # relu(bn(y) + residual)   (identity residual path)
    o_ref[...] = jnp.maximum(y_ref[...] * s_ref[...] + b_ref[...] + r_ref[...], 0.0)


def _bn_add_bn_relu_kernel(y_ref, r_ref, sy_ref, by_ref, sr_ref, br_ref, o_ref):
    # relu(bn(y) + bn(residual))   (downsample residual path)
    main = y_ref[...] * sy_ref[...] + by_ref[...]
    res = r_ref[...] * sr_ref[...] + br_ref[...]
    o_ref[...] = jnp.maximum(main + res, 0.0)


def _lane_layout(n, h, w, c):
    """Choose a guaranteed lane-dense (rows, lanes) slab layout for (N,H,W,C)."""
    m = n * h * w
    if 128 % c == 0:
        reps = 128 // c
        mp = ((m + reps - 1) // reps) * reps       # pad rows so mp*c % 128 == 0
        return {"mode": "dense", "m": m, "mp": mp, "c": c,
                "rows": (mp * c) // 128, "lanes": 128}
    cp = ((c + 127) // 128) * 128                  # pad channels to 128 multiple
    return {"mode": "cpad", "m": m, "mp": m, "c": c, "cp": cp,
            "rows": m, "lanes": cp}


def _pack_tensor(t_nhwc, L):
    c = t_nhwc.shape[-1]
    flat = t_nhwc.reshape(L["m"], c)
    if L["mode"] == "dense":
        if L["mp"] != L["m"]:
            flat = jnp.pad(flat, ((0, L["mp"] - L["m"]), (0, 0)))
        return flat.reshape(L["rows"], 128)
    return jnp.pad(flat, ((0, 0), (0, L["cp"] - c)))


def _pack_vec(v, L):
    if L["mode"] == "dense":
        return jnp.tile(v, 128 // L["c"]).reshape(1, 128)
    return jnp.pad(v, (0, L["cp"] - L["c"])).reshape(1, L["lanes"])


def _unpack(out, L, shape):
    n, h, w, c = shape
    if L["mode"] == "dense":
        flat = out.reshape(L["mp"], c)
        if L["mp"] != L["m"]:
            flat = flat[:L["m"]]
        return flat.reshape(n, h, w, c)
    return out[:, :c].reshape(n, h, w, c)


def _run_elementwise(kernel, slabs, vecs, tm=1024):
    rows, lanes = slabs[0].shape
    bm = rows if rows <= tm else tm               # big tiles; ragged tail via cdiv
    in_specs = ([pl.BlockSpec((bm, lanes), lambda i: (i, 0)) for _ in slabs]
                + [pl.BlockSpec((1, lanes), lambda i: (0, 0)) for _ in vecs])
    return pl.pallas_call(
        kernel,
        out_shape=jax.ShapeDtypeStruct((rows, lanes), jnp.float32),
        grid=(pl.cdiv(rows, bm),),
        in_specs=in_specs,
        out_specs=pl.BlockSpec((bm, lanes), lambda i: (i, 0)),
        compiler_params=pltpu.CompilerParams(dimension_semantics=("parallel",)),
    )(*slabs, *vecs)


def bn_add_relu(y, scale, shift, r):
    n, h, w, c = y.shape
    L = _lane_layout(n, h, w, c)
    out = _run_elementwise(_bn_add_relu_kernel,
                           [_pack_tensor(y, L), _pack_tensor(r, L)],
                           [_pack_vec(scale, L), _pack_vec(shift, L)])
    return _unpack(out, L, (n, h, w, c))


def bn_add_bn_relu(y, sy, by, r, sr, br):
    n, h, w, c = y.shape
    L = _lane_layout(n, h, w, c)
    out = _run_elementwise(_bn_add_bn_relu_kernel,
                           [_pack_tensor(y, L), _pack_tensor(r, L)],
                           [_pack_vec(sy, L), _pack_vec(by, L),
                            _pack_vec(sr, L), _pack_vec(br, L)])
    return _unpack(out, L, (n, h, w, c))


# ----------------------------------------------------------------------------
# ResidualBlock forward
# ----------------------------------------------------------------------------
def init_residual_block_params(key, in_channels, out_channels, stride):
    k1, k2, k3 = jax.random.split(key, 3)
    params = {
        "w1": 0.1 * jax.random.normal(k1, (out_channels, in_channels, 3, 3), jnp.float32),
        "g1": jnp.ones((out_channels,), jnp.float32),   # BN affine init matches PyTorch (1, 0)
        "b1": jnp.zeros((out_channels,), jnp.float32),
        "w2": 0.1 * jax.random.normal(k2, (out_channels, out_channels, 3, 3), jnp.float32),
        "g2": jnp.ones((out_channels,), jnp.float32),
        "b2": jnp.zeros((out_channels,), jnp.float32),
        "downsample": None,
    }
    if stride != 1 or in_channels != out_channels:
        params["downsample"] = {
            "w": 0.1 * jax.random.normal(k3, (out_channels, in_channels, 1, 1), jnp.float32),
            "g": jnp.ones((out_channels,), jnp.float32),
            "b": jnp.zeros((out_channels,), jnp.float32),
        }
    return params


def residual_block_forward(x_nchw, params, stride):
    x = jnp.transpose(x_nchw, (0, 2, 3, 1)).astype(jnp.float32)   # NCHW -> NHWC

    # conv1 (3x3/stride/pad 1) + fused BN1 stats; output written WITH its zero
    # pad ring so conv2 needs no wrapper-side jnp.pad of the activation.
    h1p, s1, q1, c1 = conv2d_bn_stats(x, params["w1"], stride, 1, pad_output=True)
    sc1, sh1 = _bn_scale_shift_from_stats(s1, q1, c1, params["g1"], params["b1"])

    # conv2 (3x3/1/pad 1): relu(bn1(.)) fused into the input load (pad ring
    # masked back to zero), BN2 stats fused into the same kernel.
    h2, s2, q2, c2 = conv2d_bn_stats(h1p, params["w2"], 1, 1,
                                     in_scale=sc1, in_shift=sh1,
                                     input_prepadded=True)
    sc2, sh2 = _bn_scale_shift_from_stats(s2, q2, c2, params["g2"], params["b2"])

    if params["downsample"] is not None:
        ds = params["downsample"]
        r, sr, qr, cr = conv2d_bn_stats(x, ds["w"], stride, 0)
        scr, shr = _bn_scale_shift_from_stats(sr, qr, cr, ds["g"], ds["b"])
        out = bn_add_bn_relu(h2, sc2, sh2, r, scr, shr)           # bn2 + bn(ds) + relu
    else:
        out = bn_add_relu(h2, sc2, sh2, x)                        # bn2 + identity + relu
    return jnp.transpose(out, (0, 3, 1, 2))                       # NHWC -> NCHW


# ----------------------------------------------------------------------------
# Pure-JAX reference (correctness check)
# ----------------------------------------------------------------------------
def _conv_ref(x_nchw, w, stride, pad):
    return jax.lax.conv_general_dilated(
        x_nchw, w, (stride, stride), [(pad, pad), (pad, pad)],
        dimension_numbers=("NCHW", "OIHW", "NCHW"))


def _bn_ref(y_nchw, gamma, beta, eps=1e-5):
    mean = jnp.mean(y_nchw, axis=(0, 2, 3), keepdims=True)
    var = jnp.mean(jnp.square(y_nchw - mean), axis=(0, 2, 3), keepdims=True)
    g = gamma.reshape(1, -1, 1, 1)
    b = beta.reshape(1, -1, 1, 1)
    return (y_nchw - mean) / jnp.sqrt(var + eps) * g + b


def residual_block_ref(x_nchw, params, stride):
    h = _conv_ref(x_nchw, params["w1"], stride, 1)
    h = jnp.maximum(_bn_ref(h, params["g1"], params["b1"]), 0.0)
    h = _conv_ref(h, params["w2"], 1, 1)
    h = _bn_ref(h, params["g2"], params["b2"])
    if params["downsample"] is not None:
        r = _conv_ref(x_nchw, params["downsample"]["w"], stride, 0)
        r = _bn_ref(r, params["downsample"]["g"], params["downsample"]["b"])
    else:
        r = x_nchw
    return jnp.maximum(h + r, 0.0)


# ----------------------------------------------------------------------------
if __name__ == "__main__":
    key = jax.random.PRNGKey(0)
    kx, kp1, kp2 = jax.random.split(key, 3)

    fwd = jax.jit(residual_block_forward, static_argnums=2)

    # Config 1: downsampling block (in=4, out=8, stride=2), x: (2, 4, 16, 16) NCHW
    x = jax.random.normal(kx, (2, 4, 16, 16), jnp.float32)
    params_ds = init_residual_block_params(kp1, 4, 8, 2)
    out_ds = jax.block_until_ready(fwd(x, params_ds, 2))
    ref_ds = residual_block_ref(x, params_ds, 2)
    assert out_ds.shape == (2, 8, 8, 8), out_ds.shape
    assert jnp.allclose(out_ds, ref_ds, atol=1e-3, rtol=1e-3), "mismatch (downsample block)"

    # Config 2: identity block (in=out=4, stride=1)
    params_id = init_residual_block_params(kp2, 4, 4, 1)
    out_id = jax.block_until_ready(fwd(x, params_id, 1))
    ref_id = residual_block_ref(x, params_id, 1)
    assert out_id.shape == (2, 4, 16, 16), out_id.shape
    assert jnp.allclose(out_id, ref_id, atol=1e-3, rtol=1e-3), "mismatch (identity block)"

    print("KERNEL_OK")
</pallas_src>

<mosaic_0001>
module attributes {stable_mosaic.version = 11 : i64} {
  func.func @_conv_stats_kernel(%arg0: i32, %arg1: memref<1x8x8x4xf32, #tpu.memory_space<vmem>>, %arg2: memref<4x8xf32, #tpu.memory_space<vmem>>, %arg3: memref<1x8x8x8xf32, #tpu.memory_space<vmem>>, %arg4: memref<1x2x8xf32, #tpu.memory_space<vmem>>) attributes {dimension_semantics = [#tpu.dimension_semantics<parallel>], iteration_bounds = array<i64: 2>, scalar_prefetch = 0 : i64, scratch_operands = 0 : i64, tpu.core_type = #tpu.core_type<tc>, window_params = [{transform_indices = @transform_0, window_bounds = array<i64: 1, 8, 8, 4>}, {pipeline_mode = #tpu.pipeline_mode<synchronous>, transform_indices = @transform_1, window_bounds = array<i64: 4, 8>}, {transform_indices = @transform_2, window_bounds = array<i64: 1, 8, 8, 8>}, {transform_indices = @transform_3, window_bounds = array<i64: 1, 2, 8>}]} {
    %c0 = arith.constant 0 : index
    %c0_0 = arith.constant 0 : index
    %c0_1 = arith.constant 0 : index
    %c0_2 = arith.constant 0 : index
    %0 = vector.load %arg1[%c0, %c0_0, %c0_1, %c0_2] : memref<1x8x8x4xf32, #tpu.memory_space<vmem>>, vector<1x8x8x4xf32>
    %1 = vector.shape_cast %0 : vector<1x8x8x4xf32> to vector<8x8x4xf32>
    %2 = vector.shape_cast %1 : vector<8x8x4xf32> to vector<64x4xf32>
    %c0_3 = arith.constant 0 : index
    %c0_4 = arith.constant 0 : index
    %3 = vector.load %arg2[%c0_3, %c0_4] : memref<4x8xf32, #tpu.memory_space<vmem>>, vector<4x8xf32>
    %cst = arith.constant dense<0.000000e+00> : vector<64x8xf32>
    %4 = tpu.matmul %2, %3, %cst {dimension_numbers = #tpu.dot_dimension_numbers<[1], [0], [0], [1], [0, 0, 1, 1], [], []>} : vector<64x4xf32>, vector<4x8xf32>, vector<64x8xf32> -> vector<64x8xf32>
    %cst_5 = arith.constant dense<0.000000e+00> : vector<8xf32>
    %5 = vector.multi_reduction <add>, %4, %cst_5 [0] : vector<64x8xf32> to vector<8xf32>
    %6 = vector.shape_cast %5 : vector<8xf32> to vector<1x8xf32>
    %c0_6 = arith.constant 0 : index
    %c0_7 = arith.constant 0 : index
    %c0_8 = arith.constant 0 : index
    %7 = vector.load %arg4[%c0_6, %c0_7, %c0_8] : memref<1x2x8xf32, #tpu.memory_space<vmem>>, vector<1x1x8xf32>
    %8 = vector.shape_cast %7 : vector<1x1x8xf32> to vector<1x8xf32>
    %9 = vector.shape_cast %6 : vector<1x8xf32> to vector<1x1x8xf32>
    tpu.vector_store %arg4[%c0_6, %c0_7, %c0_8], %9 {strides = array<i32>} : memref<1x2x8xf32, #tpu.memory_space<vmem>>, vector<1x1x8xf32>,
    %10 = arith.mulf %4, %4 : vector<64x8xf32>
    %cst_9 = arith.constant dense<0.000000e+00> : vector<8xf32>
    %11 = vector.multi_reduction <add>, %10, %cst_9 [0] : vector<64x8xf32> to vector<8xf32>
    %12 = vector.shape_cast %11 : vector<8xf32> to vector<1x8xf32>
    %c0_10 = arith.constant 0 : index
    %c1 = arith.constant 1 : index
    %c0_11 = arith.constant 0 : index
    %13 = vector.load %arg4[%c0_10, %c1, %c0_11] : memref<1x2x8xf32, #tpu.memory_space<vmem>>, vector<1x1x8xf32>
    %14 = vector.shape_cast %13 : vector<1x1x8xf32> to vector<1x8xf32>
    %15 = vector.shape_cast %12 : vector<1x8xf32> to vector<1x1x8xf32>
    tpu.vector_store %arg4[%c0_10, %c1, %c0_11], %15 {strides = array<i32>} : memref<1x2x8xf32, #tpu.memory_space<vmem>>, vector<1x1x8xf32>,
    %16 = vector.shape_cast %4 : vector<64x8xf32> to vector<8x8x8xf32>
    %c0_12 = arith.constant 0 : index
    %c0_13 = arith.constant 0 : index
    %c0_14 = arith.constant 0 : index
    %c0_15 = arith.constant 0 : index
    %17 = vector.load %arg3[%c0_12, %c0_13, %c0_14, %c0_15] : memref<1x8x8x8xf32, #tpu.memory_space<vmem>>, vector<1x8x8x8xf32>
    %18 = vector.shape_cast %17 : vector<1x8x8x8xf32> to vector<8x8x8xf32>
    %19 = vector.shape_cast %16 : vector<8x8x8xf32> to vector<1x8x8x8xf32>
    tpu.vector_store %arg3[%c0_12, %c0_13, %c0_14, %c0_15], %19 {strides = array<i32>} : memref<1x8x8x8xf32, #tpu.memory_space<vmem>>, vector<1x8x8x8xf32>,
    return
  }
  func.func @transform_0(%arg0: i32) -> (i32, i32, i32, i32) {
    %c0_i32 = arith.constant 0 : i32
    %c0_i32_0 = arith.constant 0 : i32
    %c0_i32_1 = arith.constant 0 : i32
    %c0_i32_2 = arith.constant 0 : i32
    return %arg0, %c0_i32, %c0_i32_0, %c0_i32_1 : i32, i32, i32, i32
  }
  func.func @transform_1(%arg0: i32) -> (i32, i32) {
    %c0_i32 = arith.constant 0 : i32
    %c0_i32_0 = arith.constant 0 : i32
    %c0_i32_1 = arith.constant 0 : i32
    return %c0_i32, %c0_i32_0 : i32, i32
  }
  func.func @transform_2(%arg0: i32) -> (i32, i32, i32, i32) {
    %c0_i32 = arith.constant 0 : i32
    %c0_i32_0 = arith.constant 0 : i32
    %c0_i32_1 = arith.constant 0 : i32
    %c0_i32_2 = arith.constant 0 : i32
    return %arg0, %c0_i32, %c0_i32_0, %c0_i32_1 : i32, i32, i32, i32
  }
  func.func @transform_3(%arg0: i32) -> (i32, i32, i32) {
    %c0_i32 = arith.constant 0 : i32
    %c0_i32_0 = arith.constant 0 : i32
    %c0_i32_1 = arith.constant 0 : i32
    return %arg0, %c0_i32, %c0_i32_0 : i32, i32, i32
  }
}

module attributes {stable_mosaic.version = 11 : i64} {
  func.func @_conv_stats_kernel(%arg0: i32, %arg1: memref<4x9x9x4xf32, #tpu.memory_space<vmem>>, %arg2: memref<36x8xf32, #tpu.memory_space<vmem>>, %arg3: memref<1x10x10x8xf32, #tpu.memory_space<vmem>>, %arg4: memref<1x2x8xf32, #tpu.memory_space<vmem>>) attributes {dimension_semantics = [#tpu.dimension_semantics<parallel>], iteration_bounds = array<i64: 2>, scalar_prefetch = 0 : i64, scratch_operands = 0 : i64, tpu.core_type = #tpu.core_type<tc>, window_params = [{transform_indices = @transform_0, window_bounds = array<i64: 4, 9, 9, 4>}, {pipeline_mode = #tpu.pipeline_mode<synchronous>, transform_indices = @transform_1, window_bounds = array<i64: 36, 8>}, {transform_indices = @transform_2, window_bounds = array<i64: 1, 10, 10, 8>}, {transform_indices = @transform_3, window_bounds = array<i64: 1, 2, 8>}]} {
    %c0 = arith.constant 0 : index
    %c0_0 = arith.constant 0 : index
    %c0_1 = arith.constant 0 : index
    %c0_2 = arith.constant 0 : index
    %0 = vector.load %arg1[%c0, %c0_0, %c0_1, %c0_2] : memref<4x9x9x4xf32, #tpu.memory_space<vmem>>, vector<1x8x8x4xf32>
    %1 = vector.shape_cast %0 : vector<1x8x8x4xf32> to vector<8x8x4xf32>
    %c1 = arith.constant 1 : index
    %c0_3 = arith.constant 0 : index
    %c0_4 = arith.constant 0 : index
    %c0_5 = arith.constant 0 : index
    %2 = vector.load %arg1[%c1, %c0_3, %c0_4, %c0_5] : memref<4x9x9x4xf32, #tpu.memory_space<vmem>>, vector<1x8x8x4xf32>
    %3 = vector.shape_cast %2 : vector<1x8x8x4xf32> to vector<8x8x4xf32>
    %c0_6 = arith.constant 0 : index
    %c0_7 = arith.constant 0 : index
    %c1_8 = arith.constant 1 : index
    %c0_9 = arith.constant 0 : index
    %4 = vector.load %arg1[%c0_6, %c0_7, %c1_8, %c0_9] : memref<4x9x9x4xf32, #tpu.memory_space<vmem>>, vector<1x8x8x4xf32>
    %5 = vector.shape_cast %4 : vector<1x8x8x4xf32> to vector<8x8x4xf32>
    %c2 = arith.constant 2 : index
    %c0_10 = arith.constant 0 : index
    %c0_11 = arith.constant 0 : index
    %c0_12 = arith.constant 0 : index
    %6 = vector.load %arg1[%c2, %c0_10, %c0_11, %c0_12] : memref<4x9x9x4xf32, #tpu.memory_space<vmem>>, vector<1x8x8x4xf32>
    %7 = vector.shape_cast %6 : vector<1x8x8x4xf32> to vector<8x8x4xf32>
    %c3 = arith.constant 3 : index
    %c0_13 = arith.constant 0 : index
    %c0_14 = arith.constant 0 : index
    %c0_15 = arith.constant 0 : index
    %8 = vector.load %arg1[%c3, %c0_13, %c0_14, %c0_15] : memref<4x9x9x4xf32, #tpu.memory_space<vmem>>, vector<1x8x8x4xf32>
    %9 = vector.shape_cast %8 : vector<1x8x8x4xf32> to vector<8x8x4xf32>
    %c2_16 = arith.constant 2 : index
    %c0_17 = arith.constant 0 : index
    %c1_18 = arith.constant 1 : index
    %c0_19 = arith.constant 0 : index
    %10 = vector.load %arg1[%c2_16, %c0_17, %c1_18, %c0_19] : memref<4x9x9x4xf32, #tpu.memory_space<vmem>>, vector<1x8x8x4xf32>
    %11 = vector.shape_cast %10 : vector<1x8x8x4xf32> to vector<8x8x4xf32>
    %c0_20 = arith.constant 0 : index
    %c1_21 = arith.constant 1 : index
    %c0_22 = arith.constant 0 : index
    %c0_23 = arith.constant 0 : index
    %12 = vector.load %arg1[%c0_20, %c1_21, %c0_22, %c0_23] : memref<4x9x9x4xf32, #tpu.memory_space<vmem>>, vector<1x8x8x4xf32>
    %13 = vector.shape_cast %12 : vector<1x8x8x4xf32> to vector<8x8x4xf32>
    %c1_24 = arith.constant 1 : index
    %c1_25 = arith.constant 1 : index
    %c0_26 = arith.constant 0 : index
    %c0_27 = arith.constant 0 : index
    %14 = vector.load %arg1[%c1_24, %c1_25, %c0_26, %c0_27] : memref<4x9x9x4xf32, #tpu.memory_space<vmem>>, vector<1x8x8x4xf32>
    %15 = vector.shape_cast %14 : vector<1x8x8x4xf32> to vector<8x8x4xf32>
    %c0_28 = arith.constant 0 : index
    %c1_29 = arith.constant 1 : index
    %c1_30 = arith.constant 1 : index
    %c0_31 = arith.constant 0 : index
    %16 = vector.load %arg1[%c0_28, %c1_29, %c1_30, %c0_31] : memref<4x9x9x4xf32, #tpu.memory_space<vmem>>, vector<1x8x8x4xf32>
    %17 = vector.shape_cast %16 : vector<1x8x8x4xf32> to vector<8x8x4xf32>
    %18 = tpu.concatenate %1, %3, %5, %7, %9, %11, %13, %15, %17 in 2 : vector<8x8x4xf32>, vector<8x8x4xf32>, vector<8x8x4xf32>, vector<8x8x4xf32>, vector<8x8x4xf32>, vector<8x8x4xf32>, vector<8x8x4xf32>, vector<8x8x4xf32>, vector<8x8x4xf32> -> vector<8x8x36xf32>
    %19 = vector.shape_cast %18 : vector<8x8x36xf32> to vector<64x36xf32>
    %c0_32 = arith.constant 0 : index
    %c0_33 = arith.constant 0 : index
    %20 = vector.load %arg2[%c0_32, %c0_33] : memref<36x8xf32, #tpu.memory_space<vmem>>, vector<36x8xf32>
    %cst = arith.constant dense<0.000000e+00> : vector<64x8xf32>
    %21 = tpu.matmul %19, %20, %cst {dimension_numbers = #tpu.dot_dimension_numbers<[1], [0], [0], [1], [0, 0, 1, 1], [], []>} : vector<64x36xf32>, vector<36x8xf32>, vector<64x8xf32> -> vector<64x8xf32>
    %cst_34 = arith.constant dense<0.000000e+00> : vector<8xf32>
    %22 = vector.multi_reduction <add>, %21, %cst_34 [0] : vector<64x8xf32> to vector<8xf32>
    %23 = vector.shape_cast %22 : vector<8xf32> to vector<1x8xf32>
    %c0_35 = arith.constant 0 : index
    %c0_36 = arith.constant 0 : index
    %c0_37 = arith.constant 0 : index
    %24 = vector.load %arg4[%c0_35, %c0_36, %c0_37] : memref<1x2x8xf32, #tpu.memory_space<vmem>>, vector<1x1x8xf32>
    %25 = vector.shape_cast %24 : vector<1x1x8xf32> to vector<1x8xf32>
    %26 = vector.shape_cast %23 : vector<1x8xf32> to vector<1x1x8xf32>
    tpu.vector_store %arg4[%c0_35, %c0_36, %c0_37], %26 {strides = array<i32>} : memref<1x2x8xf32, #tpu.memory_space<vmem>>, vector<1x1x8xf32>,
    %27 = arith.mulf %21, %21 : vector<64x8xf32>
    %cst_38 = arith.constant dense<0.000000e+00> : vector<8xf32>
    %28 = vector.multi_reduction <add>, %27, %cst_38 [0] : vector<64x8xf32> to vector<8xf32>
    %29 = vector.shape_cast %28 : vector<8xf32> to vector<1x8xf32>
    %c0_39 = arith.constant 0 : index
    %c1_40 = arith.constant 1 : index
    %c0_41 = arith.constant 0 : index
    %30 = vector.load %arg4[%c0_39, %c1_40, %c0_41] : memref<1x2x8xf32, #tpu.memory_space<vmem>>, vector<1x1x8xf32>
    %31 = vector.shape_cast %30 : vector<1x1x8xf32> to vector<1x8xf32>
    %32 = vector.shape_cast %29 : vector<1x8xf32> to vector<1x1x8xf32>
    tpu.vector_store %arg4[%c0_39, %c1_40, %c0_41], %32 {strides = array<i32>} : memref<1x2x8xf32, #tpu.memory_space<vmem>>, vector<1x1x8xf32>,
    %33 = vector.shape_cast %21 : vector<64x8xf32> to vector<8x8x8xf32>
    %cst_42 = arith.constant 0.000000e+00 : f32
    %34 = vector.broadcast %cst_42 : f32 to vector<1x10x10x8xf32>
    %c0_43 = arith.constant 0 : index
    %c0_44 = arith.constant 0 : index
    %c0_45 = arith.constant 0 : index
    %c0_46 = arith.constant 0 : index
    %35 = vector.load %arg3[%c0_43, %c0_44, %c0_45, %c0_46] : memref<1x10x10x8xf32, #tpu.memory_space<vmem>>, vector<1x10x10x8xf32>
    tpu.vector_store %arg3[%c0_43, %c0_44, %c0_45, %c0_46], %34 {strides = array<i32>} : memref<1x10x10x8xf32, #tpu.memory_space<vmem>>, vector<1x10x10x8xf32>,
    %c0_47 = arith.constant 0 : index
    %c1_48 = arith.constant 1 : index
    %c1_49 = arith.constant 1 : index
    %c0_50 = arith.constant 0 : index
    %36 = vector.load %arg3[%c0_47, %c1_48, %c1_49, %c0_50] : memref<1x10x10x8xf32, #tpu.memory_space<vmem>>, vector<1x8x8x8xf32>
    %37 = vector.shape_cast %36 : vector<1x8x8x8xf32> to vector<8x8x8xf32>
    %38 = vector.shape_cast %33 : vector<8x8x8xf32> to vector<1x8x8x8xf32>
    tpu.vector_store %arg3[%c0_47, %c1_48, %c1_49, %c0_50], %38 {strides = array<i32>} : memref<1x10x10x8xf32, #tpu.memory_space<vmem>>, vector<1x8x8x8xf32>,
    return
  }
  func.func @transform_0(%arg0: i32) -> (i32, i32, i32, i32) {
    %c0_i32 = arith.constant 0 : i32
    %c0_i32_0 = arith.constant 0 : i32
    %c0_i32_1 = arith.constant 0 : i32
    %c0_i32_2 = arith.constant 0 : i32
    return %arg0, %c0_i32, %c0_i32_0, %c0_i32_1 : i32, i32, i32, i32
  }
  func.func @transform_1(%arg0: i32) -> (i32, i32) {
    %c0_i32 = arith.constant 0 : i32
    %c0_i32_0 = arith.constant 0 : i32
    %c0_i32_1 = arith.constant 0 : i32
    return %c0_i32, %c0_i32_0 : i32, i32
  }
  func.func @transform_2(%arg0: i32) -> (i32, i32, i32, i32) {
    %c0_i32 = arith.constant 0 : i32
    %c0_i32_0 = arith.constant 0 : i32
    %c0_i32_1 = arith.constant 0 : i32
    %c0_i32_2 = arith.constant 0 : i32
    return %arg0, %c0_i32, %c0_i32_0, %c0_i32_1 : i32, i32, i32, i32
  }
  func.func @transform_3(%arg0: i32) -> (i32, i32, i32) {
    %c0_i32 = arith.constant 0 : i32
    %c0_i32_0 = arith.constant 0 : i32
    %c0_i32_1 = arith.constant 0 : i32
    return %arg0, %c0_i32, %c0_i32_0 : i32, i32, i32
  }
}

module attributes {stable_mosaic.version = 11 : i64} {
  func.func @_conv_stats_kernel(%arg0: i32, %arg1: memref<1x10x10x8xf32, #tpu.memory_space<vmem>>, %arg2: memref<72x8xf32, #tpu.memory_space<vmem>>, %arg3: memref<1x8xf32, #tpu.memory_space<vmem>>, %arg4: memref<1x8xf32, #tpu.memory_space<vmem>>, %arg5: memref<1x8x8x8xf32, #tpu.memory_space<vmem>>, %arg6: memref<1x2x8xf32, #tpu.memory_space<vmem>>) attributes {dimension_semantics = [#tpu.dimension_semantics<parallel>], iteration_bounds = array<i64: 2>, scalar_prefetch = 0 : i64, scratch_operands = 0 : i64, tpu.core_type = #tpu.core_type<tc>, window_params = [{transform_indices = @transform_0, window_bounds = array<i64: 1, 10, 10, 8>}, {pipeline_mode = #tpu.pipeline_mode<synchronous>, transform_indices = @transform_1, window_bounds = array<i64: 72, 8>}, {pipeline_mode = #tpu.pipeline_mode<synchronous>, transform_indices = @transform_2, window_bounds = array<i64: 1, 8>}, {pipeline_mode = #tpu.pipeline_mode<synchronous>, transform_indices = @transform_3, window_bounds = array<i64: 1, 8>}, {transform_indices = @transform_4, window_bounds = array<i64: 1, 8, 8, 8>}, {transform_indices = @transform_5, window_bounds = array<i64: 1, 2, 8>}]} {
    %c0 = arith.constant 0 : index
    %c0_0 = arith.constant 0 : index
    %c0_1 = arith.constant 0 : index
    %c0_2 = arith.constant 0 : index
    %0 = vector.load %arg1[%c0, %c0_0, %c0_1, %c0_2] : memref<1x10x10x8xf32, #tpu.memory_space<vmem>>, vector<1x10x10x8xf32>
    %1 = vector.shape_cast %0 : vector<1x10x10x8xf32> to vector<10x10x8xf32>
    %2 = tpu.iota {dimensions = array<i32: 0>} : vector<10x10x8xi32>
    %3 = tpu.iota {dimensions = array<i32: 1>} : vector<10x10x8xi32>
    %c1_i32 = arith.constant 1 : i32
    %4 = vector.broadcast %c1_i32 : i32 to vector<10x10x8xi32>
    %5 = arith.cmpi sge, %2, %4 : vector<10x10x8xi32>
    %c9_i32 = arith.constant 9 : i32
    %6 = vector.broadcast %c9_i32 : i32 to vector<10x10x8xi32>
    %7 = arith.cmpi slt, %2, %6 : vector<10x10x8xi32>
    %8 = arith.andi %5, %7 : vector<10x10x8xi1>
    %c1_i32_3 = arith.constant 1 : i32
    %9 = vector.broadcast %c1_i32_3 : i32 to vector<10x10x8xi32>
    %10 = arith.cmpi sge, %3, %9 : vector<10x10x8xi32>
    %11 = arith.andi %8, %10 : vector<10x10x8xi1>
    %c9_i32_4 = arith.constant 9 : i32
    %12 = vector.broadcast %c9_i32_4 : i32 to vector<10x10x8xi32>
    %13 = arith.cmpi slt, %3, %12 : vector<10x10x8xi32>
    %14 = arith.andi %11, %13 : vector<10x10x8xi1>
    %c0_5 = arith.constant 0 : index
    %c0_6 = arith.constant 0 : index
    %15 = vector.load %arg3[%c0_5, %c0_6] : memref<1x8xf32, #tpu.memory_space<vmem>>, vector<1x8xf32>
    %16 = vector.shape_cast %15 : vector<1x8xf32> to vector<1x1x8xf32>
    %c0_7 = arith.constant 0 : index
    %c0_8 = arith.constant 0 : index
    %17 = vector.load %arg4[%c0_7, %c0_8] : memref<1x8xf32, #tpu.memory_space<vmem>>, vector<1x8xf32>
    %18 = vector.shape_cast %17 : vector<1x8xf32> to vector<1x1x8xf32>
    %19 = vector.broadcast %16 : vector<1x1x8xf32> to vector<10x10x8xf32>
    %20 = arith.mulf %1, %19 : vector<10x10x8xf32>
    %21 = vector.broadcast %18 : vector<1x1x8xf32> to vector<10x10x8xf32>
    %22 = arith.addf %20, %21 : vector<10x10x8xf32>
    %cst = arith.constant 0.000000e+00 : f32
    %23 = vector.broadcast %cst : f32 to vector<10x10x8xf32>
    %24 = arith.maximumf %22, %23 : vector<10x10x8xf32>
    %cst_9 = arith.constant 0.000000e+00 : f32
    %25 = vector.broadcast %cst_9 : f32 to vector<10x10x8xf32>
    %26 = arith.select %14, %24, %25 : vector<10x10x8xi1>, vector<10x10x8xf32>
    %27 = vector.extract_strided_slice %26 {offsets = [0, 0, 0], sizes = [8, 8, 8], strides = [1, 1, 1]} : vector<10x10x8xf32> to vector<8x8x8xf32>
    %28 = vector.extract_strided_slice %26 {offsets = [0, 1, 0], sizes = [8, 8, 8], strides = [1, 1, 1]} : vector<10x10x8xf32> to vector<8x8x8xf32>
    %29 = vector.extract_strided_slice %26 {offsets = [0, 2, 0], sizes = [8, 8, 8], strides = [1, 1, 1]} : vector<10x10x8xf32> to vector<8x8x8xf32>
    %30 = vector.extract_strided_slice %26 {offsets = [1, 0, 0], sizes = [8, 8, 8], strides = [1, 1, 1]} : vector<10x10x8xf32> to vector<8x8x8xf32>
    %31 = vector.extract_strided_slice %26 {offsets = [1, 1, 0], sizes = [8, 8, 8], strides = [1, 1, 1]} : vector<10x10x8xf32> to vector<8x8x8xf32>
    %32 = vector.extract_strided_slice %26 {offsets = [1, 2, 0], sizes = [8, 8, 8], strides = [1, 1, 1]} : vector<10x10x8xf32> to vector<8x8x8xf32>
    %33 = vector.extract_strided_slice %26 {offsets = [2, 0, 0], sizes = [8, 8, 8], strides = [1, 1, 1]} : vector<10x10x8xf32> to vector<8x8x8xf32>
    %34 = vector.extract_strided_slice %26 {offsets = [2, 1, 0], sizes = [8, 8, 8], strides = [1, 1, 1]} : vector<10x10x8xf32> to vector<8x8x8xf32>
    %35 = vector.extract_strided_slice %26 {offsets = [2, 2, 0], sizes = [8, 8, 8], strides = [1, 1, 1]} : vector<10x10x8xf32> to vector<8x8x8xf32>
    %36 = tpu.concatenate %27, %28, %29, %30, %31, %32, %33, %34, %35 in 2 : vector<8x8x8xf32>, vector<8x8x8xf32>, vector<8x8x8xf32>, vector<8x8x8xf32>, vector<8x8x8xf32>, vector<8x8x8xf32>, vector<8x8x8xf32>, vector<8x8x8xf32>, vector<8x8x8xf32> -> vector<8x8x72xf32>
    %37 = vector.shape_cast %36 : vector<8x8x72xf32> to vector<64x72xf32>
    %c0_10 = arith.constant 0 : index
    %c0_11 = arith.constant 0 : index
    %38 = vector.load %arg2[%c0_10, %c0_11] : memref<72x8xf32, #tpu.memory_space<vmem>>, vector<72x8xf32>
    %cst_12 = arith.constant dense<0.000000e+00> : vector<64x8xf32>
    %39 = tpu.matmul %37, %38, %cst_12 {dimension_numbers = #tpu.dot_dimension_numbers<[1], [0], [0], [1], [0, 0, 1, 1], [], []>} : vector<64x72xf32>, vector<72x8xf32>, vector<64x8xf32> -> vector<64x8xf32>
    %cst_13 = arith.constant dense<0.000000e+00> : vector<8xf32>
    %40 = vector.multi_reduction <add>, %39, %cst_13 [0] : vector<64x8xf32> to vector<8xf32>
    %41 = vector.shape_cast %40 : vector<8xf32> to vector<1x8xf32>
    %c0_14 = arith.constant 0 : index
    %c0_15 = arith.constant 0 : index
    %c0_16 = arith.constant 0 : index
    %42 = vector.load %arg6[%c0_14, %c0_15, %c0_16] : memref<1x2x8xf32, #tpu.memory_space<vmem>>, vector<1x1x8xf32>
    %43 = vector.shape_cast %42 : vector<1x1x8xf32> to vector<1x8xf32>
    %44 = vector.shape_cast %41 : vector<1x8xf32> to vector<1x1x8xf32>
    tpu.vector_store %arg6[%c0_14, %c0_15, %c0_16], %44 {strides = array<i32>} : memref<1x2x8xf32, #tpu.memory_space<vmem>>, vector<1x1x8xf32>,
    %45 = arith.mulf %39, %39 : vector<64x8xf32>
    %cst_17 = arith.constant dense<0.000000e+00> : vector<8xf32>
    %46 = vector.multi_reduction <add>, %45, %cst_17 [0] : vector<64x8xf32> to vector<8xf32>
    %47 = vector.shape_cast %46 : vector<8xf32> to vector<1x8xf32>
    %c0_18 = arith.constant 0 : index
    %c1 = arith.constant 1 : index
    %c0_19 = arith.constant 0 : index
    %48 = vector.load %arg6[%c0_18, %c1, %c0_19] : memref<1x2x8xf32, #tpu.memory_space<vmem>>, vector<1x1x8xf32>
    %49 = vector.shape_cast %48 : vector<1x1x8xf32> to vector<1x8xf32>
    %50 = vector.shape_cast %47 : vector<1x8xf32> to vector<1x1x8xf32>
    tpu.vector_store %arg6[%c0_18, %c1, %c0_19], %50 {strides = array<i32>} : memref<1x2x8xf32, #tpu.memory_space<vmem>>, vector<1x1x8xf32>,
    %51 = vector.shape_cast %39 : vector<64x8xf32> to vector<8x8x8xf32>
    %c0_20 = arith.constant 0 : index
    %c0_21 = arith.constant 0 : index
    %c0_22 = arith.constant 0 : index
    %c0_23 = arith.constant 0 : index
    %52 = vector.load %arg5[%c0_20, %c0_21, %c0_22, %c0_23] : memref<1x8x8x8xf32, #tpu.memory_space<vmem>>, vector<1x8x8x8xf32>
    %53 = vector.shape_cast %52 : vector<1x8x8x8xf32> to vector<8x8x8xf32>
    %54 = vector.shape_cast %51 : vector<8x8x8xf32> to vector<1x8x8x8xf32>
    tpu.vector_store %arg5[%c0_20, %c0_21, %c0_22, %c0_23], %54 {strides = array<i32>} : memref<1x8x8x8xf32, #tpu.memory_space<vmem>>, vector<1x8x8x8xf32>,
    return
  }
  func.func @transform_0(%arg0: i32) -> (i32, i32, i32, i32) {
    %c0_i32 = arith.constant 0 : i32
    %c0_i32_0 = arith.constant 0 : i32
    %c0_i32_1 = arith.constant 0 : i32
    %c0_i32_2 = arith.constant 0 : i32
    return %arg0, %c0_i32, %c0_i32_0, %c0_i32_1 : i32, i32, i32, i32
  }
  func.func @transform_1(%arg0: i32) -> (i32, i32) {
    %c0_i32 = arith.constant 0 : i32
    %c0_i32_0 = arith.constant 0 : i32
    %c0_i32_1 = arith.constant 0 : i32
    return %c0_i32, %c0_i32_0 : i32, i32
  }
  func.func @transform_2(%arg0: i32) -> (i32, i32) {
    %c0_i32 = arith.constant 0 : i32
    %c0_i32_0 = arith.constant 0 : i32
    %c0_i32_1 = arith.constant 0 : i32
    return %c0_i32, %c0_i32_0 : i32, i32
  }
  func.func @transform_3(%arg0: i32) -> (i32, i32) {
    %c0_i32 = arith.constant 0 : i32
    %c0_i32_0 = arith.constant 0 : i32
    %c0_i32_1 = arith.constant 0 : i32
    return %c0_i32, %c0_i32_0 : i32, i32
  }
  func.func @transform_4(%arg0: i32) -> (i32, i32, i32, i32) {
    %c0_i32 = arith.constant 0 : i32
    %c0_i32_0 = arith.constant 0 : i32
    %c0_i32_1 = arith.constant 0 : i32
    %c0_i32_2 = arith.constant 0 : i32
    return %arg0, %c0_i32, %c0_i32_0, %c0_i32_1 : i32, i32, i32, i32
  }
  func.func @transform_5(%arg0: i32) -> (i32, i32, i32) {
    %c0_i32 = arith.constant 0 : i32
    %c0_i32_0 = arith.constant 0 : i32
    %c0_i32_1 = arith.constant 0 : i32
    return %arg0, %c0_i32, %c0_i32_0 : i32, i32, i32
  }
}

module attributes {stable_mosaic.version = 11 : i64} {
  func.func @_bn_add_bn_relu_kernel(%arg0: i32, %arg1: memref<8x128xf32, #tpu.memory_space<vmem>>, %arg2: memref<8x128xf32, #tpu.memory_space<vmem>>, %arg3: memref<1x128xf32, #tpu.memory_space<vmem>>, %arg4: memref<1x128xf32, #tpu.memory_space<vmem>>, %arg5: memref<1x128xf32, #tpu.memory_space<vmem>>, %arg6: memref<1x128xf32, #tpu.memory_space<vmem>>, %arg7: memref<8x128xf32, #tpu.memory_space<vmem>>) attributes {dimension_semantics = [#tpu.dimension_semantics<parallel>], iteration_bounds = array<i64: 1>, scalar_prefetch = 0 : i64, scratch_operands = 0 : i64, tpu.core_type = #tpu.core_type<tc>, window_params = [{transform_indices = @transform_0, window_bounds = array<i64: 8, 128>}, {transform_indices = @transform_1, window_bounds = array<i64: 8, 128>}, {pipeline_mode = #tpu.pipeline_mode<synchronous>, transform_indices = @transform_2, window_bounds = array<i64: 1, 128>}, {pipeline_mode = #tpu.pipeline_mode<synchronous>, transform_indices = @transform_3, window_bounds = array<i64: 1, 128>}, {pipeline_mode = #tpu.pipeline_mode<synchronous>, transform_indices = @transform_4, window_bounds = array<i64: 1, 128>}, {pipeline_mode = #tpu.pipeline_mode<synchronous>, transform_indices = @transform_5, window_bounds = array<i64: 1, 128>}, {transform_indices = @transform_6, window_bounds = array<i64: 8, 128>}]} {
    %c0 = arith.constant 0 : index
    %c0_0 = arith.constant 0 : index
    %0 = vector.load %arg1[%c0, %c0_0] : memref<8x128xf32, #tpu.memory_space<vmem>>, vector<8x128xf32>
    %c0_1 = arith.constant 0 : index
    %c0_2 = arith.constant 0 : index
    %1 = vector.load %arg3[%c0_1, %c0_2] : memref<1x128xf32, #tpu.memory_space<vmem>>, vector<1x128xf32>
    %2 = vector.broadcast %1 : vector<1x128xf32> to vector<8x128xf32>
    %3 = arith.mulf %0, %2 : vector<8x128xf32>
    %c0_3 = arith.constant 0 : index
    %c0_4 = arith.constant 0 : index
    %4 = vector.load %arg4[%c0_3, %c0_4] : memref<1x128xf32, #tpu.memory_space<vmem>>, vector<1x128xf32>
    %5 = vector.broadcast %4 : vector<1x128xf32> to vector<8x128xf32>
    %6 = arith.addf %3, %5 : vector<8x128xf32>
    %c0_5 = arith.constant 0 : index
    %c0_6 = arith.constant 0 : index
    %7 = vector.load %arg2[%c0_5, %c0_6] : memref<8x128xf32, #tpu.memory_space<vmem>>, vector<8x128xf32>
    %c0_7 = arith.constant 0 : index
    %c0_8 = arith.constant 0 : index
    %8 = vector.load %arg5[%c0_7, %c0_8] : memref<1x128xf32, #tpu.memory_space<vmem>>, vector<1x128xf32>
    %9 = vector.broadcast %8 : vector<1x128xf32> to vector<8x128xf32>
    %10 = arith.mulf %7, %9 : vector<8x128xf32>
    %c0_9 = arith.constant 0 : index
    %c0_10 = arith.constant 0 : index
    %11 = vector.load %arg6[%c0_9, %c0_10] : memref<1x128xf32, #tpu.memory_space<vmem>>, vector<1x128xf32>
    %12 = vector.broadcast %11 : vector<1x128xf32> to vector<8x128xf32>
    %13 = arith.addf %10, %12 : vector<8x128xf32>
    %14 = arith.addf %6, %13 : vector<8x128xf32>
    %cst = arith.constant 0.000000e+00 : f32
    %15 = vector.broadcast %cst : f32 to vector<8x128xf32>
    %16 = arith.maximumf %14, %15 : vector<8x128xf32>
    %c0_11 = arith.constant 0 : index
    %c0_12 = arith.constant 0 : index
    %17 = vector.load %arg7[%c0_11, %c0_12] : memref<8x128xf32, #tpu.memory_space<vmem>>, vector<8x128xf32>
    tpu.vector_store %arg7[%c0_11, %c0_12], %16 {strides = array<i32>} : memref<8x128xf32, #tpu.memory_space<vmem>>, vector<8x128xf32>,
    return
  }
  func.func @transform_0(%arg0: i32) -> (i32, i32) {
    %c0_i32 = arith.constant 0 : i32
    %c0_i32_0 = arith.constant 0 : i32
    return %arg0, %c0_i32 : i32, i32
  }
  func.func @transform_1(%arg0: i32) -> (i32, i32) {
    %c0_i32 = arith.constant 0 : i32
    %c0_i32_0 = arith.constant 0 : i32
    return %arg0, %c0_i32 : i32, i32
  }
  func.func @transform_2(%arg0: i32) -> (i32, i32) {
    %c0_i32 = arith.constant 0 : i32
    %c0_i32_0 = arith.constant 0 : i32
    %c0_i32_1 = arith.constant 0 : i32
    return %c0_i32, %c0_i32_0 : i32, i32
  }
  func.func @transform_3(%arg0: i32) -> (i32, i32) {
    %c0_i32 = arith.constant 0 : i32
    %c0_i32_0 = arith.constant 0 : i32
    %c0_i32_1 = arith.constant 0 : i32
    return %c0_i32, %c0_i32_0 : i32, i32
  }
  func.func @transform_4(%arg0: i32) -> (i32, i32) {
    %c0_i32 = arith.constant 0 : i32
    %c0_i32_0 = arith.constant 0 : i32
    %c0_i32_1 = arith.constant 0 : i32
    return %c0_i32, %c0_i32_0 : i32, i32
  }
  func.func @transform_5(%arg0: i32) -> (i32, i32) {
    %c0_i32 = arith.constant 0 : i32
    %c0_i32_0 = arith.constant 0 : i32
    %c0_i32_1 = arith.constant 0 : i32
    return %c0_i32, %c0_i32_0 : i32, i32
  }
  func.func @transform_6(%arg0: i32) -> (i32, i32) {
    %c0_i32 = arith.constant 0 : i32
    %c0_i32_0 = arith.constant 0 : i32
    return %arg0, %c0_i32 : i32, i32
  }
}

</mosaic_0001>

<llo_original>
// kernel: tile.38
$region0: #{tile.38}
  #allocation0 [shape = 's32[1]{0}', space=sflag, size = 0x4, scoped, tag = 'scoped memory for tile.38']
  %s0 = inlined_call_operand.vmem [shape: f32[8], index: 0, kind: input, shape index: {}]
  %s1 = inlined_call_operand.vmem [shape: f32[16,8], index: 1, kind: output, shape index: {}]
  // Predicated region
  $region2: #{tile.38} parent=0 // pred_check
    _
  $region3: #{tile.38} parent=0 // pred_check_branch
    %3 = sbr.rel (0) target = $region5
  $region4: #{tile.38} parent=0 // pred_region
    _
  $region5: #{tile.38} parent=0 // pred_fallthru
    _
  %v4 = vld [vmem:[%s0] ss:$0 sm:$0xff]
  %5 = vst [vmem:[%s1] sm:$0xff] %v4
  %s6 = scalar_lea.vmem %s1, 8
  %7 = vst [vmem:[%s6] sm:$0xff] %v4

// kernel: tile.39
$region0: #{tile.39}
  %s0 = inlined_call_operand.vmem [shape: f32[16,8], index: 0, kind: input, shape index: {}]
  %s1 = inlined_call_operand.vmem [shape: f32[1,128], index: 1, kind: output, shape index: {}]
  $region1: #{tile.39} parent=0
    #allocation0 [shape = 'u8[4096]{0}', space=vmem, size = 0x1000, scoped, tag = 'scoped mem for output reshape']
    %v2 = vld [vmem:[%s0] sm:$0x1]
    %vm3 = vcmask 64512
    %4 = vst.msk [vmem:[#allocation0] sm:$0x1] %vm3, %v2
    %s5 = scalar_lea.vmem %s0, 15
    %v6 = vld [vmem:[%s5] sm:$0x1]
    %7 = vrot.lane.b32.xlu0 %v6, 120
    %v8 = vpop.permute.xlu0 %7
    %vm9 = vcmask 1048512
    %10 = vst.msk [vmem:[#allocation0] sm:$0x1] %vm9, %v8
    %s11 = scalar_lea.vmem %s0, 14
    %v12 = vld [vmem:[%s11] sm:$0x1]
    %13 = vrot.lane.b32.xlu0 %v12, 112
    %v14 = vpop.permute.xlu0 %13
    %vm15 = vcmask 982912
    %16 = vst.msk [vmem:[#allocation0] sm:$0x1] %vm15, %v14
    %s17 = scalar_lea.vmem %s0, 13
    %v18 = vld [vmem:[%s17] sm:$0x1]
    %19 = vrot.lane.b32.xlu0 %v18, 104
    %v20 = vpop.permute.xlu0 %19
    %vm21 = vcmask 917312
    %22 = vst.msk [vmem:[#allocation0] sm:$0x1] %vm21, %v20
    %s23 = scalar_lea.vmem %s0, 12
    %v24 = vld [vmem:[%s23] sm:$0x1]
    %25 = vrot.lane.b32.xlu0 %v24, 96
    %v26 = vpop.permute.xlu0 %25
    %vm27 = vcmask 851712
    %28 = vst.msk [vmem:[#allocation0] sm:$0x1] %vm27, %v26
    %s29 = scalar_lea.vmem %s0, 11
    %v30 = vld [vmem:[%s29] sm:$0x1]
    %31 = vrot.lane.b32.xlu0 %v30, 88
    %v32 = vpop.permute.xlu0 %31
    %vm33 = vcmask 786112
    %34 = vst.msk [vmem:[#allocation0] sm:$0x1] %vm33, %v32
    %s35 = scalar_lea.vmem %s0, 10
    %v36 = vld [vmem:[%s35] sm:$0x1]
    %37 = vrot.lane.b32.xlu0 %v36, 80
    %v38 = vpop.permute.xlu0 %37
    %vm39 = vcmask 720512
    %40 = vst.msk [vmem:[#allocation0] sm:$0x1] %vm39, %v38
    %s41 = scalar_lea.vmem %s0, 9
    %v42 = vld [vmem:[%s41] sm:$0x1]
    %43 = vrot.lane.b32.xlu0 %v42, 72
    %v44 = vpop.permute.xlu0 %43
    %vm45 = vcmask 654912
    %46 = vst.msk [vmem:[#allocation0] sm:$0x1] %vm45, %v44
    %s47 = scalar_lea.vmem %s0, 8
    %v48 = vld [vmem:[%s47] sm:$0x1]
    %49 = vrot.lane.b32.xlu0 %v48, 64
    %v50 = vpop.permute.xlu0 %49
    %vm51 = vcmask 589312
    %52 = vst.msk [vmem:[#allocation0] sm:$0x1] %vm51, %v50
    %s53 = scalar_lea.vmem %s0, 7
    %v54 = vld [vmem:[%s53] sm:$0x1]
    %55 = vrot.lane.b32.xlu0 %v54, 56
    %v56 = vpop.permute.xlu0 %55
    %vm57 = vcmask 523712
    %58 = vst.msk [vmem:[#allocation0] sm:$0x1] %vm57, %v56
    %s59 = scalar_lea.vmem %s0, 6
    %v60 = vld [vmem:[%s59] sm:$0x1]
    %61 = vrot.lane.b32.xlu0 %v60, 48
    %v62 = vpop.permute.xlu0 %61
    %vm63 = vcmask 458112
    %64 = vst.msk [vmem:[#allocation0] sm:$0x1] %vm63, %v62
    %s65 = scalar_lea.vmem %s0, 5
    %v66 = vld [vmem:[%s65] sm:$0x1]
    %67 = vrot.lane.b32.xlu0 %v66, 40
    %v68 = vpop.permute.xlu0 %67
    %vm69 = vcmask 392512
    %70 = vst.msk [vmem:[#allocation0] sm:$0x1] %vm69, %v68
    %s71 = scalar_lea.vmem %s0, 4
    %v72 = vld [vmem:[%s71] sm:$0x1]
    %73 = vrot.lane.b32.xlu0 %v72, 32
    %v74 = vpop.permute.xlu0 %73
    %vm75 = vcmask 326912
    %76 = vst.msk [vmem:[#allocation0] sm:$0x1] %vm75, %v74
    %s77 = scalar_lea.vmem %s0, 3
    %v78 = vld [vmem:[%s77] sm:$0x1]
    %79 = vrot.lane.b32.xlu0 %v78, 24
    %v80 = vpop.permute.xlu0 %79
    %vm81 = vcmask 261312
    %82 = vst.msk [vmem:[#allocation0] sm:$0x1] %vm81, %v80
    %s83 = scalar_lea.vmem %s0, 2
    %v84 = vld [vmem:[%s83] sm:$0x1]
    %85 = vrot.lane.b32.xlu0 %v84, 16
    %v86 = vpop.permute.xlu0 %85
    %vm87 = vcmask 195712
    %88 = vst.msk [vmem:[#allocation0] sm:$0x1] %vm87, %v86
    %s89 = scalar_lea.vmem %s0, 1
    %v90 = vld [vmem:[%s89] sm:$0x1]
    %91 = vrot.lane.b32.xlu0 %v90, 8
    %v92 = vpop.permute.xlu0 %91
    %vm93 = vcmask 130112
    %94 = vst.msk [vmem:[#allocation0] sm:$0x1] %vm93, %v92
    %s96 = sshllo.u32 0, 1
    %v98 = vld [vmem:[#allocation0] sm:%s96]
    %s99 = sshllo.u32 0, 1
    %100 = vst [vmem:[%s1] sm:%s99] %v98

// kernel: residual_block_forward.6
$region0: #{residual_block_forward.6}
  #allocation0 [shape = 'u32[]', space=smem, size = 0x4, offset = 0x4, fixed_abs, tag = 'smem constant byte address 0x4 - core index']
  #allocation1 [shape = 'u32[144,128]{1,0:T(1,128)}', space=vmem, size = 0x12000, scoped, tag = 'internal scratch']
  %s0 = inlined_call_operand.vmem [shape: f32[2,8,8,4], index: 0, kind: input, shape index: {}]
  %s1 = inlined_call_operand.vmem [shape: f32[4,8], index: 1, kind: input, shape index: {}]
  %s2 = inlined_call_operand.vmem [shape: f32[2,8,8,8], index: 2, kind: output, shape index: {0}]
  %s3 = inlined_call_operand.vmem [shape: f32[2,2,8], index: 3, kind: output, shape index: {1}]
  %4 = xla_tuple %s2, %s3
  %s5 = sld [smem:[#allocation0]]
  $region49: #{residual_block_forward.6} parent=0
    _
  %s7 = ssub.s32 1, %s5
  %s8 = scalar_select 0, %s7, %s5
  loop: start=0, step=1, limit=4
  $region2: #{residual_block_forward.6} parent=0 // loop_pre_header
    _
  $region3: #{residual_block_forward.6} parent=0 // loop_header
    %s10 = sphi 0, %s14
    %p11 = scmp.ge.s32.totalorder %s10, 4
    %s20 = sphi 0, %s22
    %s23 = sphi 0, %s20
    %s24 = sphi 0, %s23
    %s40 = sphi 0, %s24
    %s44 = sphi 0, %s44
    %s46 = sphi 0, %s44
    %s47 = sphi 0, %s46
    %s61 = sphi 0, %s47
    %s67 = sphi 0, %s69
    %s70 = sphi 0, %s67
    %s71 = sphi 0, %s70
    %s87 = sphi 0, %s71
    %s93 = sphi 0, %s95
    %s96 = sphi 0, %s93
    %s97 = sphi 0, %s96
    %s113 = sphi 0, %s97
  $region4: #{residual_block_forward.6} parent=0 // loop_header_branch
    %13 = sbr.rel (%p11) target = $region8
  $region5: #{residual_block_forward.6} parent=0 // loop_body
    %s15 = ssub.s32 %s10, 1
    %s16 = ssub.s32 %s10, 2
    %s17 = sadd.s32 %s10, 1
    %s18 = ssub.s32 %s10, %s17
    %p19 = scmp.eq.s32.totalorder %s18, 0
    %s21 = sadd.s32 %s20, 1
    %s22 = scalar_select %p19, %s20, %s21
    %p25 = pneg %p19
    %p26 = scmp.eq.s32.totalorder %s10, 1
    %p27 = por %p25, %p26
    %p28 = scmp.ne.s32.totalorder %s20, %s23
    %p29 = scmp.eq.s32.totalorder %s10, 0
    %p30 = por %p28, %p29
    %p31 = scmp.ne.s32.totalorder %s20, %s23
    %p32 = scmp.eq.s32.totalorder %s15, 1
    %p33 = por %p31, %p32
    %p34 = scmp.ne.s32.totalorder %s23, %s24
    %p35 = scmp.eq.s32.totalorder %s15, 0
    %p36 = por %p34, %p35
    %p37 = scmp.ne.s32.totalorder %s23, %s24
    %p38 = scmp.eq.s32.totalorder %s16, 1
    %p39 = por %p37, %p38
    %p41 = scmp.ne.s32.totalorder %s24, %s40
    %p42 = scmp.eq.s32.totalorder %s16, 0
    %p43 = por %p41, %p42
    %s45 = sadd.s32 %s44, 1
    %p48 = scmp.eq.s32.totalorder %s10, 1
    %p49 = scmp.ne.s32.totalorder %s44, %s46
    %p50 = scmp.eq.s32.totalorder %s10, 0
    %p51 = por %p49, %p50
    %p52 = scmp.ne.s32.totalorder %s44, %s46
    %p53 = scmp.eq.s32.totalorder %s15, 1
    %p54 = por %p52, %p53
    %p55 = scmp.ne.s32.totalorder %s46, %s47
    %p56 = scmp.eq.s32.totalorder %s15, 0
    %p57 = por %p55, %p56
    %p58 = scmp.ne.s32.totalorder %s46, %s47
    %p59 = scmp.eq.s32.totalorder %s16, 1
    %p60 = por %p58, %p59
    %p62 = scmp.ne.s32.totalorder %s47, %s61
    %p63 = scmp.eq.s32.totalorder %s16, 0
    %p64 = por %p62, %p63
    %s65 = ssub.s32 %s10, %s17
    %p66 = scmp.eq.s32.totalorder %s65, 0
    %s68 = sadd.s32 %s67, 1
    %s69 = scalar_select %p66, %s67, %s68
    %p72 = pneg %p66
    %p73 = scmp.eq.s32.totalorder %s10, 1
    %p74 = por %p72, %p73
    %p75 = scmp.ne.s32.totalorder %s67, %s70
    %p76 = scmp.eq.s32.totalorder %s10, 0
    %p77 = por %p75, %p76
    %p78 = scmp.ne.s32.totalorder %s67, %s70
    %p79 = scmp.eq.s32.totalorder %s15, 1
    %p80 = por %p78, %p79
    %p81 = scmp.ne.s32.totalorder %s70, %s71
    %p82 = scmp.eq.s32.totalorder %s15, 0
    %p83 = por %p81, %p82
    %p84 = scmp.ne.s32.totalorder %s70, %s71
    %p85 = scmp.eq.s32.totalorder %s16, 1
    %p86 = por %p84, %p85
    %p88 = scmp.ne.s32.totalorder %s71, %s87
    %p89 = scmp.eq.s32.totalorder %s16, 0
    %p90 = por %p88, %p89
    %s91 = ssub.s32 %s10, %s17
    %p92 = scmp.eq.s32.totalorder %s91, 0
    %s94 = sadd.s32 %s93, 1
    %s95 = scalar_select %p92, %s93, %s94
    %p98 = pneg %p92
    %p99 = scmp.eq.s32.totalorder %s10, 1
    %p100 = por %p98, %p99
    %p101 = scmp.ne.s32.totalorder %s93, %s96
    %p102 = scmp.eq.s32.totalorder %s10, 0
    %p103 = por %p101, %p102
    %p104 = scmp.ne.s32.totalorder %s93, %s96
    %p105 = scmp.eq.s32.totalorder %s15, 1
    %p106 = por %p104, %p105
    %p107 = scmp.ne.s32.totalorder %s96, %s97
    %p108 = scmp.eq.s32.totalorder %s15, 0
    %p109 = por %p107, %p108
    %p110 = scmp.ne.s32.totalorder %s96, %s97
    %p111 = scmp.eq.s32.totalorder %s16, 1
    %p112 = por %p110, %p111
    %p114 = scmp.ne.s32.totalorder %s97, %s113
    %p115 = scmp.eq.s32.totalorder %s16, 0
    %p116 = por %p114, %p115
    %p117 = scmp.le.s32.totalorder 1, %s10
    %p118 = scmp.lt.s32.totalorder %s10, 3
    %p119 = pnand %p117, %p118
    %p120 = pneg %p119
    // Predicated region
    $region9: #{residual_block_forward.6} parent=5 // pred_check
      _
    $region10: #{residual_block_forward.6} parent=5 // pred_check_branch
      %122 = sbr.rel (%p119) target = $region12
    $region11: #{residual_block_forward.6} parent=5 // pred_region
      %s123 = ssub.s32 %s10, 1
      // Predicated region
      $region13: #{residual_block_forward.6} parent=11 // pred_check
        %p124 = pneg %p57
      $region14: #{residual_block_forward.6} parent=11 // pred_check_branch
        %126 = sbr.rel (%p124) target = $region16
      $region15: #{residual_block_forward.6} parent=11 // pred_region
        _
      $region16: #{residual_block_forward.6} parent=11 // pred_fallthru
        _
    $region12: #{residual_block_forward.6} parent=5 // pred_fallthru
      _
    %p127 = scmp.lt.s32.totalorder %s10, 2
    // Predicated region
    $region17: #{residual_block_forward.6} parent=5 // pred_check
      %p128 = pneg %p127
    $region18: #{residual_block_forward.6} parent=5 // pred_check_branch
      %130 = sbr.rel (%p128) target = $region20
    $region19: #{residual_block_forward.6} parent=5 // pred_region
      // Predicated region
      $region21: #{residual_block_forward.6} parent=19 // pred_check
        %p131 = pneg %p30
      $region22: #{residual_block_forward.6} parent=19 // pred_check_branch
        %133 = sbr.rel (%p131) target = $region24
      $region23: #{residual_block_forward.6} parent=19 // pred_region
        %p134 = scmp.lt.s32.totalorder %s10, 1
        %s135 = scalar_select %p134, %s10, 1
        %s136 = smul.addr %s135, 8
        %s137 = smul.addr %s136, 8
        %s138 = scalar_lea.vmem %s0, %s137
      $region24: #{residual_block_forward.6} parent=19 // pred_fallthru
        _
    $region20: #{residual_block_forward.6} parent=5 // pred_fallthru
      _
    %p139 = scmp.le.s32.totalorder 1, %s10
    %p140 = scmp.lt.s32.totalorder %s10, 3
    %p141 = pnand %p139, %p140
    %p142 = pneg %p141
    // Predicated region
    $region25: #{residual_block_forward.6} parent=5 // pred_check
      _
    $region26: #{residual_block_forward.6} parent=5 // pred_check_branch
      %144 = sbr.rel (%p141) target = $region28
    $region27: #{residual_block_forward.6} parent=5 // pred_region
      %s145 = ssub.s32 %s10, 1
      %p146 = scmp.lt.s32.totalorder %s15, 1
      %s147 = scalar_select %p146, %s15, 1
      %s148 = smul.addr %s147, 8
      %s149 = smul.addr %s148, 8
      %s150 = scalar_lea.vmem %s0, %s149
      %p151 = pneg %p36
      %p152 = pneg %p33
      %p153 = pneg %p57
      %p154 = pneg %p54
      %p155 = pneg %p83
      %p156 = pneg %p80
      %p157 = scmp.lt.s32.totalorder %s15, 1
      %s158 = scalar_select %p157, %s15, 1
      %s159 = smul.addr %s158, 8
      %s160 = smul.addr %s159, 8
      %s161 = scalar_lea.vmem %s2, %s160
      %p162 = pneg %p109
      %p163 = pneg %p106
      %p164 = scmp.lt.s32.totalorder %s15, 1
      %s165 = scalar_select %p164, %s15, 1
      %s166 = smul.addr %s165, 2
      %s167 = scalar_lea.vmem %s3, %s166
      %p168 = scmp.lt.s32.totalorder %s15, 1
      %s169 = scalar_select %p168, %s15, 1
      %s170 = smul.addr %s169, 8
      %s171 = smul.addr %s170, 8
      %s172 = scalar_lea.vmem %s0, %s171
      %p173 = scmp.lt.s32.totalorder %s15, 1
      %s174 = scalar_select %p173, %s15, 1
      %s175 = smul.addr %s174, 8
      %s176 = smul.addr %s175, 8
      %s177 = scalar_lea.vmem %s2, %s176
      %p178 = scmp.lt.s32.totalorder %s15, 1
      %s179 = scalar_select %p178, %s15, 1
      %s180 = smul.addr %s179, 2
      %s181 = scalar_lea.vmem %s3, %s180
      %v182 = vld [vmem:[%s172] sm:$0xff]
      %v183 = vld [vmem:[%s172 + $0x8] sm:$0xff]
      %v184 = vld [vmem:[%s172 + $0x10] sm:$0xff]
      %v185 = vld [vmem:[%s172 + $0x18] sm:$0xff]
      %v186 = vld [vmem:[%s172 + $0x20] sm:$0xff]
      %v187 = vld [vmem:[%s172 + $0x28] sm:$0xff]
      %v188 = vld [vmem:[%s172 + $0x30] sm:$0xff]
      %v189 = vld [vmem:[%s172 + $0x38] sm:$0xff]
      %v190 = vld [vmem:[%s1] sm:$0xf]
      %vm191 = vcmask 31744
      %v193 = vsel %vm191, %v182, 0
      %v196 = vsel %vm191, %v183, 0
      %v199 = vsel %vm191, %v184, 0
      %v202 = vsel %vm191, %v185, 0
      %v205 = vsel %vm191, %v186, 0
      %v208 = vsel %vm191, %v187, 0
      %v211 = vsel %vm191, %v188, 0
      %v214 = vsel %vm191, %v189, 0
      %vm216 = vcmask 1043456
      %v218 = vsel %vm216, %v190, 0
      %220 = vmatprep.subr.mxu0 0.0
      %221 = vmatpush1.msra.mxu0 %v218
      %222 = vmatprep.subr.mxu0 0.0
      %223 = vmatpush1.msra.mxu0 0.0
      %224 = vmatprep.subr.mxu0 0.0
      %225 = vmatpush1.msra.mxu0 0.0
      %226 = vmatprep.subr.mxu0 0.0
      %227 = vmatpush1.msra.mxu0 0.0
      %228 = vmatprep.subr.mxu0 0.0
      %229 = vmatpush1.msra.mxu0 0.0
      %230 = vmatprep.subr.mxu0 0.0
      %231 = vmatpush1.msra.mxu0 0.0
      %232 = vmatprep.subr.mxu0 0.0
      %233 = vmatpush1.msra.mxu0 0.0
      %234 = vmatprep.subr.mxu0 0.0
      %235 = vmatpush1.msra.mxu0 0.0
      %236 = vmatprep.subr.mxu0 0.0
      %237 = vmatpush1.msra.mxu0 0.0
      %238 = vmatprep.subr.mxu0 0.0
      %239 = vmatpush1.msra.mxu0 0.0
      %240 = vmatprep.subr.mxu0 0.0
      %241 = vmatpush1.msra.mxu0 0.0
      %242 = vmatprep.subr.mxu0 0.0
      %243 = vmatpush1.msra.mxu0 0.0
      %244 = vmatprep.subr.mxu0 0.0
      %245 = vmatpush1.msra.mxu0 0.0
      %246 = vmatprep.subr.mxu0 0.0
      %247 = vmatpush1.msra.mxu0 0.0
      %248 = vmatprep.subr.mxu0 0.0
      %249 = vmatpush1.msra.mxu0 0.0
      %250 = vmatprep.subr.mxu0 0.0
      %251 = vmatpush1.msra.mxu0 0.0
      %252 = vmatprep.subr.mxu0 0.0
      %253 = vmatpush1.msra.mxu0 0.0
      %254 = vmatprep.subr.mxu0 0.0
      %255 = vmatpush1.msra.mxu0 0.0
      %256 = vmatprep.subr.mxu0 0.0
      %257 = vmatpush1.msra.mxu0 0.0
      %258 = vmatprep.subr.mxu0 0.0
      %259 = vmatpush1.msra.mxu0 0.0
      %260 = vmatprep.subr.mxu0 0.0
      %261 = vmatpush1.msra.mxu0 0.0
      %262 = vmatprep.subr.mxu0 0.0
      %263 = vmatpush1.msra.mxu0 0.0
      %264 = vmatprep.subr.mxu0 0.0
      %265 = vmatpush1.msra.mxu0 0.0
      %266 = vmatprep.subr.mxu0 0.0
      %267 = vmatpush1.msra.mxu0 0.0
      %268 = vmatprep.subr.mxu0 0.0
      %269 = vmatpush1.msra.mxu0 0.0
      %270 = vmatprep.subr.mxu0 0.0
      %271 = vmatpush1.msra.mxu0 0.0
      %272 = vmatprep.subr.mxu0 0.0
      %273 = vmatpush1.msra.mxu0 0.0
      %274 = vmatprep.subr.mxu0 0.0
      %275 = vmatpush1.msra.mxu0 0.0
      %276 = vmatprep.subr.mxu0 0.0
      %277 = vmatpush1.msra.mxu0 0.0
      %278 = vmatprep.subr.mxu0 0.0
      %279 = vmatpush1.msra.mxu0 0.0
      %280 = vmatprep.subr.mxu0 0.0
      %281 = vmatpush1.msra.mxu0 0.0
      %282 = vmatprep.subr.mxu0 0.0
      %283 = vmatpush1.msra.mxu0 0.0
      %284 = vmatprep.mubr.f32.mxu0 0.0
      %285 = vmatmul.mubr.f32.gmra.mrb[0].mxu0 %v193
      %v286 = vpop.f32.mrb[0].mxu0
      %v287 = vadd.f32 0.0, %v286
      %v288 = vpop.f32.mrb[0].mxu0
      %289 = vmatprep.mubr.f32.mxu0 0.0
      %290 = vmatmul.mubr.f32.gmra.mrb[0].mxu0 %v196
      %v291 = vpop.f32.mrb[0].mxu0
      %v292 = vadd.f32 0.0, %v291
      %v293 = vpop.f32.mrb[0].mxu0
      %294 = vmatprep.mubr.f32.mxu0 0.0
      %295 = vmatmul.mubr.f32.gmra.mrb[0].mxu0 %v199
      %v296 = vpop.f32.mrb[0].mxu0
      %v297 = vadd.f32 0.0, %v296
      %v298 = vpop.f32.mrb[0].mxu0
      %299 = vmatprep.mubr.f32.mxu0 0.0
      %300 = vmatmul.mubr.f32.gmra.mrb[0].mxu0 %v202
      %v301 = vpop.f32.mrb[0].mxu0
      %v302 = vadd.f32 0.0, %v301
      %v303 = vpop.f32.mrb[0].mxu0
      %304 = vmatprep.mubr.f32.mxu0 0.0
      %305 = vmatmul.mubr.f32.gmra.mrb[0].mxu0 %v205
      %v306 = vpop.f32.mrb[0].mxu0
      %v307 = vadd.f32 0.0, %v306
      %v308 = vpop.f32.mrb[0].mxu0
      %309 = vmatprep.mubr.f32.mxu0 0.0
      %310 = vmatmul.mubr.f32.gmra.mrb[0].mxu0 %v208
      %v311 = vpop.f32.mrb[0].mxu0
      %v312 = vadd.f32 0.0, %v311
      %v313 = vpop.f32.mrb[0].mxu0
      %314 = vmatprep.mubr.f32.mxu0 0.0
      %315 = vmatmul.mubr.f32.gmra.mrb[0].mxu0 %v211
      %v316 = vpop.f32.mrb[0].mxu0
      %v317 = vadd.f32 0.0, %v316
      %v318 = vpop.f32.mrb[0].mxu0
      %319 = vmatprep.mubr.f32.mxu0 0.0
      %320 = vmatmul.mubr.f32.gmra.mrb[0].mxu0 %v214
      %v321 = vpop.f32.mrb[0].mxu0
      %v322 = vadd.f32 0.0, %v321
      %v323 = vpop.f32.mrb[0].mxu0
      %324 = vdwg.mxu0
      %vm325 = vcmask 64512
      %v326 = vsel %vm325, %v287, 0.0
      %v327 = vsel %vm325, %v292, 0.0
      %v328 = vadd.f32 %v326, %v327
      %v329 = vsel %vm325, %v297, 0.0
      %v330 = vadd.f32 %v328, %v329
      %v331 = vsel %vm325, %v302, 0.0
      %v332 = vadd.f32 %v330, %v331
      %v333 = vsel %vm325, %v307, 0.0
      %v334 = vadd.f32 %v332, %v333
      %v335 = vsel %vm325, %v312, 0.0
      %v336 = vadd.f32 %v334, %v335
      %v337 = vsel %vm325, %v317, 0.0
      %v338 = vadd.f32 %v336, %v337
      %v339 = vsel %vm325, %v322, 0.0
      %v340 = vadd.f32 %v338, %v339
      %v341 = vrot.slane %v340, 4
      %v342 = vadd.f32 %v340, %v341
      %v343 = vrot.slane %v342, 2
      %v344 = vadd.f32 %v342, %v343
      %v345 = vrot.slane %v344, 1
      %v346 = vadd.f32 %v344, %v345
      %vm347 = vcmask 57344
      %348 = vst.msk [vmem:[%s181] sm:$0x1] %vm347, %v346
      %v349 = vmul.f32 %v287, %v287
      %v350 = vmul.f32 %v292, %v292
      %v351 = vmul.f32 %v297, %v297
      %v352 = vmul.f32 %v302, %v302
      %v353 = vmul.f32 %v307, %v307
      %v354 = vmul.f32 %v312, %v312
      %v355 = vmul.f32 %v317, %v317
      %v356 = vmul.f32 %v322, %v322
      %v357 = vsel %vm325, %v349, 0.0
      %v358 = vsel %vm325, %v350, 0.0
      %v359 = vadd.f32 %v357, %v358
      %v360 = vsel %vm325, %v351, 0.0
      %v361 = vadd.f32 %v359, %v360
      %v362 = vsel %vm325, %v352, 0.0
      %v363 = vadd.f32 %v361, %v362
      %v364 = vsel %vm325, %v353, 0.0
      %v365 = vadd.f32 %v363, %v364
      %v366 = vsel %vm325, %v354, 0.0
      %v367 = vadd.f32 %v365, %v366
      %v368 = vsel %vm325, %v355, 0.0
      %v369 = vadd.f32 %v367, %v368
      %v370 = vsel %vm325, %v356, 0.0
      %v371 = vadd.f32 %v369, %v370
      %v372 = vrot.slane %v371, 4
      %v373 = vadd.f32 %v371, %v372
      %v374 = vrot.slane %v373, 2
      %v375 = vadd.f32 %v373, %v374
      %v376 = vrot.slane %v375, 1
      %v377 = vadd.f32 %v375, %v376
      %378 = vst.msk [vmem:[%s181 + $0x1] sm:$0x1] %vm347, %v377
      %379 = vst.msk [vmem:[%s177] sm:$0xff] %vm325, %v287
      %380 = vst.msk [vmem:[%s177 + $0x8] sm:$0xff] %vm325, %v292
      %381 = vst.msk [vmem:[%s177 + $0x10] sm:$0xff] %vm325, %v297
      %382 = vst.msk [vmem:[%s177 + $0x18] sm:$0xff] %vm325, %v302
      %383 = vst.msk [vmem:[%s177 + $0x20] sm:$0xff] %vm325, %v307
      %384 = vst.msk [vmem:[%s177 + $0x28] sm:$0xff] %vm325, %v312
      %385 = vst.msk [vmem:[%s177 + $0x30] sm:$0xff] %vm325, %v317
      %386 = vst.msk [vmem:[%s177 + $0x38] sm:$0xff] %vm325, %v322
      %p387 = scmp.lt.s32.totalorder %s15, 1
      %s388 = scalar_select %p387, %s15, 1
      %s389 = smul.addr %s388, 8
      %s390 = smul.addr %s389, 8
      %s391 = scalar_lea.vmem %s2, %s390
      %p392 = scmp.lt.s32.totalorder %s15, 1
      %s393 = scalar_select %p392, %s15, 1
      %s394 = smul.addr %s393, 2
      %s395 = scalar_lea.vmem %s3, %s394
      // Predicated region
      $region29: #{residual_block_forward.6} parent=27 // pred_check
        %p396 = pneg %p80
      $region30: #{residual_block_forward.6} parent=27 // pred_check_branch
        %398 = sbr.rel (%p396) target = $region32
      $region31: #{residual_block_forward.6} parent=27 // pred_region
        _
      $region32: #{residual_block_forward.6} parent=27 // pred_fallthru
        _
      // Predicated region
      $region33: #{residual_block_forward.6} parent=27 // pred_check
        %p399 = pneg %p106
      $region34: #{residual_block_forward.6} parent=27 // pred_check_branch
        %401 = sbr.rel (%p399) target = $region36
      $region35: #{residual_block_forward.6} parent=27 // pred_region
        _
      $region36: #{residual_block_forward.6} parent=27 // pred_fallthru
        _
    $region28: #{residual_block_forward.6} parent=5 // pred_fallthru
      _
    %p402 = scmp.le.s32.totalorder 2, %s10
    // Predicated region
    $region37: #{residual_block_forward.6} parent=5 // pred_check
      %p403 = pneg %p402
    $region38: #{residual_block_forward.6} parent=5 // pred_check_branch
      %405 = sbr.rel (%p403) target = $region40
    $region39: #{residual_block_forward.6} parent=5 // pred_region
      %s406 = ssub.s32 %s10, 2
      // Predicated region
      $region41: #{residual_block_forward.6} parent=39 // pred_check
        %p407 = pneg %p86
      $region42: #{residual_block_forward.6} parent=39 // pred_check_branch
        %409 = sbr.rel (%p407) target = $region44
      $region43: #{residual_block_forward.6} parent=39 // pred_region
        %p410 = scmp.lt.s32.totalorder %s16, 1
        %s411 = scalar_select %p410, %s16, 1
        %s412 = smul.addr %s411, 8
        %s413 = smul.addr %s412, 8
        %s414 = scalar_lea.vmem %s2, %s413
      $region44: #{residual_block_forward.6} parent=39 // pred_fallthru
        _
      // Predicated region
      $region45: #{residual_block_forward.6} parent=39 // pred_check
        %p415 = pneg %p112
      $region46: #{residual_block_forward.6} parent=39 // pred_check_branch
        %417 = sbr.rel (%p415) target = $region48
      $region47: #{residual_block_forward.6} parent=39 // pred_region
        %p418 = scmp.lt.s32.totalorder %s16, 1
        %s419 = scalar_select %p418, %s16, 1
        %s420 = smul.addr %s419, 2
        %s421 = scalar_lea.vmem %s3, %s420
      $region48: #{residual_block_forward.6} parent=39 // pred_fallthru
        _
    $region40: #{residual_block_forward.6} parent=5 // pred_fallthru
      _
  $region6: #{residual_block_forward.6} parent=0 // loop_footer
    %s14 = sadd.s32 1, %s10
  $region7: #{residual_block_forward.6} parent=0 // loop_footer_branch
    %9 = sbr.rel target = $region3
  $region8: #{residual_block_forward.6} parent=0 // loop_exit
    _

// kernel: residual_block_forward.4
$region0: #{residual_block_forward.4}
  #allocation0 [shape = 'u32[]', space=smem, size = 0x4, offset = 0x4, fixed_abs, tag = 'smem constant byte address 0x4 - core index']
  #allocation1 [shape = 'u32[144,128]{1,0:T(1,128)}', space=vmem, size = 0x12000, scoped, tag = 'internal scratch']
  %s0 = inlined_call_operand.vmem [shape: f32[8,9,9,4], index: 0, kind: input, shape index: {}]
  %s1 = inlined_call_operand.vmem [shape: f32[36,8], index: 1, kind: input, shape index: {}]
  %s2 = inlined_call_operand.vmem [shape: f32[2,10,10,8], index: 2, kind: output, shape index: {0}]
  %s3 = inlined_call_operand.vmem [shape: f32[2,2,8], index: 3, kind: output, shape index: {1}]
  %4 = xla_tuple %s2, %s3
  %s5 = sld [smem:[#allocation0]]
  $region49: #{residual_block_forward.4} parent=0
    _
  %s7 = ssub.s32 1, %s5
  %s8 = scalar_select 0, %s7, %s5
  loop: start=0, step=1, limit=4
  $region2: #{residual_block_forward.4} parent=0 // loop_pre_header
    _
  $region3: #{residual_block_forward.4} parent=0 // loop_header
    %s10 = sphi 0, %s14
    %p11 = scmp.ge.s32.totalorder %s10, 4
    %s20 = sphi 0, %s22
    %s23 = sphi 0, %s20
    %s24 = sphi 0, %s23
    %s40 = sphi 0, %s24
    %s44 = sphi 0, %s44
    %s46 = sphi 0, %s44
    %s47 = sphi 0, %s46
    %s61 = sphi 0, %s47
    %s67 = sphi 0, %s69
    %s70 = sphi 0, %s67
    %s71 = sphi 0, %s70
    %s87 = sphi 0, %s71
    %s93 = sphi 0, %s95
    %s96 = sphi 0, %s93
    %s97 = sphi 0, %s96
    %s113 = sphi 0, %s97
  $region4: #{residual_block_forward.4} parent=0 // loop_header_branch
    %13 = sbr.rel (%p11) target = $region8
  $region5: #{residual_block_forward.4} parent=0 // loop_body
    %s15 = ssub.s32 %s10, 1
    %s16 = ssub.s32 %s10, 2
    %s17 = sadd.s32 %s10, 1
    %s18 = ssub.s32 %s10, %s17
    %p19 = scmp.eq.s32.totalorder %s18, 0
    %s21 = sadd.s32 %s20, 1
    %s22 = scalar_select %p19, %s20, %s21
    %p25 = pneg %p19
    %p26 = scmp.eq.s32.totalorder %s10, 1
    %p27 = por %p25, %p26
    %p28 = scmp.ne.s32.totalorder %s20, %s23
    %p29 = scmp.eq.s32.totalorder %s10, 0
    %p30 = por %p28, %p29
    %p31 = scmp.ne.s32.totalorder %s20, %s23
    %p32 = scmp.eq.s32.totalorder %s15, 1
    %p33 = por %p31, %p32
    %p34 = scmp.ne.s32.totalorder %s23, %s24
    %p35 = scmp.eq.s32.totalorder %s15, 0
    %p36 = por %p34, %p35
    %p37 = scmp.ne.s32.totalorder %s23, %s24
    %p38 = scmp.eq.s32.totalorder %s16, 1
    %p39 = por %p37, %p38
    %p41 = scmp.ne.s32.totalorder %s24, %s40
    %p42 = scmp.eq.s32.totalorder %s16, 0
    %p43 = por %p41, %p42
    %s45 = sadd.s32 %s44, 1
    %p48 = scmp.eq.s32.totalorder %s10, 1
    %p49 = scmp.ne.s32.totalorder %s44, %s46
    %p50 = scmp.eq.s32.totalorder %s10, 0
    %p51 = por %p49, %p50
    %p52 = scmp.ne.s32.totalorder %s44, %s46
    %p53 = scmp.eq.s32.totalorder %s15, 1
    %p54 = por %p52, %p53
    %p55 = scmp.ne.s32.totalorder %s46, %s47
    %p56 = scmp.eq.s32.totalorder %s15, 0
    %p57 = por %p55, %p56
    %p58 = scmp.ne.s32.totalorder %s46, %s47
    %p59 = scmp.eq.s32.totalorder %s16, 1
    %p60 = por %p58, %p59
    %p62 = scmp.ne.s32.totalorder %s47, %s61
    %p63 = scmp.eq.s32.totalorder %s16, 0
    %p64 = por %p62, %p63
    %s65 = ssub.s32 %s10, %s17
    %p66 = scmp.eq.s32.totalorder %s65, 0
    %s68 = sadd.s32 %s67, 1
    %s69 = scalar_select %p66, %s67, %s68
    %p72 = pneg %p66
    %p73 = scmp.eq.s32.totalorder %s10, 1
    %p74 = por %p72, %p73
    %p75 = scmp.ne.s32.totalorder %s67, %s70
    %p76 = scmp.eq.s32.totalorder %s10, 0
    %p77 = por %p75, %p76
    %p78 = scmp.ne.s32.totalorder %s67, %s70
    %p79 = scmp.eq.s32.totalorder %s15, 1
    %p80 = por %p78, %p79
    %p81 = scmp.ne.s32.totalorder %s70, %s71
    %p82 = scmp.eq.s32.totalorder %s15, 0
    %p83 = por %p81, %p82
    %p84 = scmp.ne.s32.totalorder %s70, %s71
    %p85 = scmp.eq.s32.totalorder %s16, 1
    %p86 = por %p84, %p85
    %p88 = scmp.ne.s32.totalorder %s71, %s87
    %p89 = scmp.eq.s32.totalorder %s16, 0
    %p90 = por %p88, %p89
    %s91 = ssub.s32 %s10, %s17
    %p92 = scmp.eq.s32.totalorder %s91, 0
    %s94 = sadd.s32 %s93, 1
    %s95 = scalar_select %p92, %s93, %s94
    %p98 = pneg %p92
    %p99 = scmp.eq.s32.totalorder %s10, 1
    %p100 = por %p98, %p99
    %p101 = scmp.ne.s32.totalorder %s93, %s96
    %p102 = scmp.eq.s32.totalorder %s10, 0
    %p103 = por %p101, %p102
    %p104 = scmp.ne.s32.totalorder %s93, %s96
    %p105 = scmp.eq.s32.totalorder %s15, 1
    %p106 = por %p104, %p105
    %p107 = scmp.ne.s32.totalorder %s96, %s97
    %p108 = scmp.eq.s32.totalorder %s15, 0
    %p109 = por %p107, %p108
    %p110 = scmp.ne.s32.totalorder %s96, %s97
    %p111 = scmp.eq.s32.totalorder %s16, 1
    %p112 = por %p110, %p111
    %p114 = scmp.ne.s32.totalorder %s97, %s113
    %p115 = scmp.eq.s32.totalorder %s16, 0
    %p116 = por %p114, %p115
    %p117 = scmp.le.s32.totalorder 1, %s10
    %p118 = scmp.lt.s32.totalorder %s10, 3
    %p119 = pnand %p117, %p118
    %p120 = pneg %p119
    // Predicated region
    $region9: #{residual_block_forward.4} parent=5 // pred_check
      _
    $region10: #{residual_block_forward.4} parent=5 // pred_check_branch
      %122 = sbr.rel (%p119) target = $region12
    $region11: #{residual_block_forward.4} parent=5 // pred_region
      %s123 = ssub.s32 %s10, 1
      // Predicated region
      $region13: #{residual_block_forward.4} parent=11 // pred_check
        %p124 = pneg %p57
      $region14: #{residual_block_forward.4} parent=11 // pred_check_branch
        %126 = sbr.rel (%p124) target = $region16
      $region15: #{residual_block_forward.4} parent=11 // pred_region
        _
      $region16: #{residual_block_forward.4} parent=11 // pred_fallthru
        _
    $region12: #{residual_block_forward.4} parent=5 // pred_fallthru
      _
    %p127 = scmp.lt.s32.totalorder %s10, 2
    // Predicated region
    $region17: #{residual_block_forward.4} parent=5 // pred_check
      %p128 = pneg %p127
    $region18: #{residual_block_forward.4} parent=5 // pred_check_branch
      %130 = sbr.rel (%p128) target = $region20
    $region19: #{residual_block_forward.4} parent=5 // pred_region
      // Predicated region
      $region21: #{residual_block_forward.4} parent=19 // pred_check
        %p131 = pneg %p30
      $region22: #{residual_block_forward.4} parent=19 // pred_check_branch
        %133 = sbr.rel (%p131) target = $region24
      $region23: #{residual_block_forward.4} parent=19 // pred_region
        %s134 = smul.u32 4, %s10
        %p135 = scmp.lt.s32.totalorder %s134, 7
        %s136 = scalar_select %p135, %s134, 7
        %s137 = smul.addr %s136, 18
        %s138 = smul.addr %s137, 8
        %s139 = scalar_lea.vmem %s0, %s138
        %s140 = smul.u32 4, %s10
      $region24: #{residual_block_forward.4} parent=19 // pred_fallthru
        _
    $region20: #{residual_block_forward.4} parent=5 // pred_fallthru
      _
    %p141 = scmp.le.s32.totalorder 1, %s10
    %p142 = scmp.lt.s32.totalorder %s10, 3
    %p143 = pnand %p141, %p142
    %p144 = pneg %p143
    // Predicated region
    $region25: #{residual_block_forward.4} parent=5 // pred_check
      _
    $region26: #{residual_block_forward.4} parent=5 // pred_check_branch
      %146 = sbr.rel (%p143) target = $region28
    $region27: #{residual_block_forward.4} parent=5 // pred_region
      %s147 = ssub.s32 %s10, 1
      %s148 = smul.u32 4, %s15
      %p149 = scmp.lt.s32.totalorder %s148, 7
      %s150 = scalar_select %p149, %s148, 7
      %s151 = smul.addr %s150, 18
      %s152 = smul.addr %s151, 8
      %s153 = scalar_lea.vmem %s0, %s152
      %p154 = pneg %p36
      %p155 = pneg %p33
      %p156 = pneg %p57
      %p157 = pneg %p54
      %p158 = pneg %p83
      %p159 = pneg %p80
      %p160 = scmp.lt.s32.totalorder %s15, 1
      %s161 = scalar_select %p160, %s15, 1
      %s162 = smul.addr %s161, 20
      %s163 = smul.addr %s162, 8
      %s164 = scalar_lea.vmem %s2, %s163
      %p165 = pneg %p109
      %p166 = pneg %p106
      %p167 = scmp.lt.s32.totalorder %s15, 1
      %s168 = scalar_select %p167, %s15, 1
      %s169 = smul.addr %s168, 2
      %s170 = scalar_lea.vmem %s3, %s169
      %s171 = smul.u32 4, %s15
      %p172 = scmp.lt.s32.totalorder %s171, 7
      %s173 = scalar_select %p172, %s171, 7
      %s174 = smul.addr %s173, 18
      %s175 = smul.addr %s174, 8
      %s176 = scalar_lea.vmem %s0, %s175
      %s177 = smul.u32 4, %s15
      %p178 = scmp.lt.s32.totalorder %s15, 1
      %s179 = scalar_select %p178, %s15, 1
      %s180 = smul.addr %s179, 20
      %s181 = smul.addr %s180, 8
      %s182 = scalar_lea.vmem %s2, %s181
      %p183 = scmp.lt.s32.totalorder %s15, 1
      %s184 = scalar_select %p183, %s15, 1
      %s185 = smul.addr %s184, 2
      %s186 = scalar_lea.vmem %s3, %s185
      %v187 = vld [vmem:[%s176] sm:$0xff]
      %v188 = vld [vmem:[%s176 + $0x10] sm:$0xff]
      %v189 = vld [vmem:[%s176 + $0x20] sm:$0xff]
      %v190 = vld [vmem:[%s176 + $0x30] sm:$0xff]
      %v191 = vld [vmem:[%s176 + $0x40] sm:$0xff]
      %v192 = vld [vmem:[%s176 + $0x50] sm:$0xff]
      %v193 = vld [vmem:[%s176 + $0x60] sm:$0xff]
      %v194 = vld [vmem:[%s176 + $0x70] sm:$0xff]
      %s195 = scalar_lea.vmem %s176, 144
      %v196 = vld [vmem:[%s195] sm:$0xff]
      %v197 = vld [vmem:[%s195 + $0x10] sm:$0xff]
      %v198 = vld [vmem:[%s195 + $0x20] sm:$0xff]
      %v199 = vld [vmem:[%s195 + $0x30] sm:$0xff]
      %v200 = vld [vmem:[%s195 + $0x40] sm:$0xff]
      %v201 = vld [vmem:[%s195 + $0x50] sm:$0xff]
      %v202 = vld [vmem:[%s195 + $0x60] sm:$0xff]
      %v203 = vld [vmem:[%s195 + $0x70] sm:$0xff]
      %v204 = vld [vmem:[%s176 + $0x1] sm:$0xff]
      %v205 = vld [vmem:[%s176 + $0x11] sm:$0xff]
      %v206 = vld [vmem:[%s176 + $0x21] sm:$0xff]
      %v207 = vld [vmem:[%s176 + $0x31] sm:$0xff]
      %v208 = vld [vmem:[%s176 + $0x41] sm:$0xff]
      %v209 = vld [vmem:[%s176 + $0x51] sm:$0xff]
      %v210 = vld [vmem:[%s176 + $0x61] sm:$0xff]
      %v211 = vld [vmem:[%s176 + $0x71] sm:$0xff]
      %s212 = scalar_lea.vmem %s176, 288
      %v213 = vld [vmem:[%s212] sm:$0xff]
      %v214 = vld [vmem:[%s212 + $0x10] sm:$0xff]
      %v215 = vld [vmem:[%s212 + $0x20] sm:$0xff]
      %v216 = vld [vmem:[%s212 + $0x30] sm:$0xff]
      %v217 = vld [vmem:[%s212 + $0x40] sm:$0xff]
      %v218 = vld [vmem:[%s212 + $0x50] sm:$0xff]
      %v219 = vld [vmem:[%s212 + $0x60] sm:$0xff]
      %v220 = vld [vmem:[%s212 + $0x70] sm:$0xff]
      %s221 = scalar_lea.vmem %s176, 432
      %v222 = vld [vmem:[%s221] sm:$0xff]
      %v223 = vld [vmem:[%s221 + $0x10] sm:$0xff]
      %v224 = vld [vmem:[%s221 + $0x20] sm:$0xff]
      %v225 = vld [vmem:[%s221 + $0x30] sm:$0xff]
      %v226 = vld [vmem:[%s221 + $0x40] sm:$0xff]
      %v227 = vld [vmem:[%s221 + $0x50] sm:$0xff]
      %v228 = vld [vmem:[%s221 + $0x60] sm:$0xff]
      %v229 = vld [vmem:[%s221 + $0x70] sm:$0xff]
      %v230 = vld [vmem:[%s212 + $0x1] sm:$0xff]
      %v231 = vld [vmem:[%s212 + $0x11] sm:$0xff]
      %v232 = vld [vmem:[%s212 + $0x21] sm:$0xff]
      %v233 = vld [vmem:[%s212 + $0x31] sm:$0xff]
      %v234 = vld [vmem:[%s212 + $0x41] sm:$0xff]
      %v235 = vld [vmem:[%s212 + $0x51] sm:$0xff]
      %v236 = vld [vmem:[%s212 + $0x61] sm:$0xff]
      %v237 = vld [vmem:[%s212 + $0x71] sm:$0xff]
      %s238 = scalar_lea.vmem %s176, 16
      %v239 = vld [vmem:[%s238] sm:$0xff]
      %v240 = vld [vmem:[%s238 + $0x10] sm:$0xff]
      %v241 = vld [vmem:[%s238 + $0x20] sm:$0xff]
      %v242 = vld [vmem:[%s238 + $0x30] sm:$0xff]
      %v243 = vld [vmem:[%s238 + $0x40] sm:$0xff]
      %v244 = vld [vmem:[%s238 + $0x50] sm:$0xff]
      %v245 = vld [vmem:[%s238 + $0x60] sm:$0xff]
      %v246 = vld [vmem:[%s238 + $0x70] sm:$0xff]
      %s247 = scalar_lea.vmem %s176, 160
      %v248 = vld [vmem:[%s247] sm:$0xff]
      %v249 = vld [vmem:[%s247 + $0x10] sm:$0xff]
      %v250 = vld [vmem:[%s247 + $0x20] sm:$0xff]
      %v251 = vld [vmem:[%s247 + $0x30] sm:$0xff]
      %v252 = vld [vmem:[%s247 + $0x40] sm:$0xff]
      %v253 = vld [vmem:[%s247 + $0x50] sm:$0xff]
      %v254 = vld [vmem:[%s247 + $0x60] sm:$0xff]
      %v255 = vld [vmem:[%s247 + $0x70] sm:$0xff]
      %v256 = vld [vmem:[%s238 + $0x1] sm:$0xff]
      %v257 = vld [vmem:[%s238 + $0x11] sm:$0xff]
      %v258 = vld [vmem:[%s238 + $0x21] sm:$0xff]
      %v259 = vld [vmem:[%s238 + $0x31] sm:$0xff]
      %v260 = vld [vmem:[%s238 + $0x41] sm:$0xff]
      %v261 = vld [vmem:[%s238 + $0x51] sm:$0xff]
      %v262 = vld [vmem:[%s238 + $0x61] sm:$0xff]
      %v263 = vld [vmem:[%s238 + $0x71] sm:$0xff]
      %272 = vrot.lane.b32.xlu0 %v196, 4
      %v273 = vpop.permute.xlu0 %272
      %274 = vrot.lane.b32.xlu0 %v197, 4
      %v275 = vpop.permute.xlu0 %274
      %276 = vrot.lane.b32.xlu0 %v198, 4
      %v277 = vpop.permute.xlu0 %276
      %278 = vrot.lane.b32.xlu0 %v199, 4
      %v279 = vpop.permute.xlu0 %278
      %280 = vrot.lane.b32.xlu0 %v200, 4
      %v281 = vpop.permute.xlu0 %280
      %282 = vrot.lane.b32.xlu0 %v201, 4
      %v283 = vpop.permute.xlu0 %282
      %284 = vrot.lane.b32.xlu0 %v202, 4
      %v285 = vpop.permute.xlu0 %284
      %286 = vrot.lane.b32.xlu0 %v203, 4
      %v287 = vpop.permute.xlu0 %286
      %304 = vrot.lane.b32.xlu0 %v204, 8
      %v305 = vpop.permute.xlu0 %304
      %306 = vrot.lane.b32.xlu0 %v205, 8
      %v307 = vpop.permute.xlu0 %306
      %308 = vrot.lane.b32.xlu0 %v206, 8
      %v309 = vpop.permute.xlu0 %308
      %310 = vrot.lane.b32.xlu0 %v207, 8
      %v311 = vpop.permute.xlu0 %310
      %312 = vrot.lane.b32.xlu0 %v208, 8
      %v313 = vpop.permute.xlu0 %312
      %314 = vrot.lane.b32.xlu0 %v209, 8
      %v315 = vpop.permute.xlu0 %314
      %316 = vrot.lane.b32.xlu0 %v210, 8
      %v317 = vpop.permute.xlu0 %316
      %318 = vrot.lane.b32.xlu0 %v211, 8
      %v319 = vpop.permute.xlu0 %318
      %336 = vrot.lane.b32.xlu0 %v213, 12
      %v337 = vpop.permute.xlu0 %336
      %338 = vrot.lane.b32.xlu0 %v214, 12
      %v339 = vpop.permute.xlu0 %338
      %340 = vrot.lane.b32.xlu0 %v215, 12
      %v341 = vpop.permute.xlu0 %340
      %342 = vrot.lane.b32.xlu0 %v216, 12
      %v343 = vpop.permute.xlu0 %342
      %344 = vrot.lane.b32.xlu0 %v217, 12
      %v345 = vpop.permute.xlu0 %344
      %346 = vrot.lane.b32.xlu0 %v218, 12
      %v347 = vpop.permute.xlu0 %346
      %348 = vrot.lane.b32.xlu0 %v219, 12
      %v349 = vpop.permute.xlu0 %348
      %350 = vrot.lane.b32.xlu0 %v220, 12
      %v351 = vpop.permute.xlu0 %350
      %368 = vrot.lane.b32.xlu0 %v222, 16
      %v369 = vpop.permute.xlu0 %368
      %370 = vrot.lane.b32.xlu0 %v223, 16
      %v371 = vpop.permute.xlu0 %370
      %372 = vrot.lane.b32.xlu0 %v224, 16
      %v373 = vpop.permute.xlu0 %372
      %374 = vrot.lane.b32.xlu0 %v225, 16
      %v375 = vpop.permute.xlu0 %374
      %376 = vrot.lane.b32.xlu0 %v226, 16
      %v377 = vpop.permute.xlu0 %376
      %378 = vrot.lane.b32.xlu0 %v227, 16
      %v379 = vpop.permute.xlu0 %378
      %380 = vrot.lane.b32.xlu0 %v228, 16
      %v381 = vpop.permute.xlu0 %380
      %382 = vrot.lane.b32.xlu0 %v229, 16
      %v383 = vpop.permute.xlu0 %382
      %400 = vrot.lane.b32.xlu0 %v230, 20
      %v401 = vpop.permute.xlu0 %400
      %402 = vrot.lane.b32.xlu0 %v231, 20
      %v403 = vpop.permute.xlu0 %402
      %404 = vrot.lane.b32.xlu0 %v232, 20
      %v405 = vpop.permute.xlu0 %404
      %406 = vrot.lane.b32.xlu0 %v233, 20
      %v407 = vpop.permute.xlu0 %406
      %408 = vrot.lane.b32.xlu0 %v234, 20
      %v409 = vpop.permute.xlu0 %408
      %410 = vrot.lane.b32.xlu0 %v235, 20
      %v411 = vpop.permute.xlu0 %410
      %412 = vrot.lane.b32.xlu0 %v236, 20
      %v413 = vpop.permute.xlu0 %412
      %414 = vrot.lane.b32.xlu0 %v237, 20
      %v415 = vpop.permute.xlu0 %414
      %432 = vrot.lane.b32.xlu0 %v239, 24
      %v433 = vpop.permute.xlu0 %432
      %434 = vrot.lane.b32.xlu0 %v240, 24
      %v435 = vpop.permute.xlu0 %434
      %436 = vrot.lane.b32.xlu0 %v241, 24
      %v437 = vpop.permute.xlu0 %436
      %438 = vrot.lane.b32.xlu0 %v242, 24
      %v439 = vpop.permute.xlu0 %438
      %440 = vrot.lane.b32.xlu0 %v243, 24
      %v441 = vpop.permute.xlu0 %440
      %442 = vrot.lane.b32.xlu0 %v244, 24
      %v443 = vpop.permute.xlu0 %442
      %444 = vrot.lane.b32.xlu0 %v245, 24
      %v445 = vpop.permute.xlu0 %444
      %446 = vrot.lane.b32.xlu0 %v246, 24
      %v447 = vpop.permute.xlu0 %446
      %464 = vrot.lane.b32.xlu0 %v248, 28
      %v465 = vpop.permute.xlu0 %464
      %466 = vrot.lane.b32.xlu0 %v249, 28
      %v467 = vpop.permute.xlu0 %466
      %468 = vrot.lane.b32.xlu0 %v250, 28
      %v469 = vpop.permute.xlu0 %468
      %470 = vrot.lane.b32.xlu0 %v251, 28
      %v471 = vpop.permute.xlu0 %470
      %472 = vrot.lane.b32.xlu0 %v252, 28
      %v473 = vpop.permute.xlu0 %472
      %474 = vrot.lane.b32.xlu0 %v253, 28
      %v475 = vpop.permute.xlu0 %474
      %476 = vrot.lane.b32.xlu0 %v254, 28
      %v477 = vpop.permute.xlu0 %476
      %478 = vrot.lane.b32.xlu0 %v255, 28
      %v479 = vpop.permute.xlu0 %478
      %496 = vrot.lane.b32.xlu0 %v256, 32
      %v497 = vpop.permute.xlu0 %496
      %498 = vrot.lane.b32.xlu0 %v257, 32
      %v499 = vpop.permute.xlu0 %498
      %500 = vrot.lane.b32.xlu0 %v258, 32
      %v501 = vpop.permute.xlu0 %500
      %502 = vrot.lane.b32.xlu0 %v259, 32
      %v503 = vpop.permute.xlu0 %502
      %504 = vrot.lane.b32.xlu0 %v260, 32
      %v505 = vpop.permute.xlu0 %504
      %506 = vrot.lane.b32.xlu0 %v261, 32
      %v507 = vpop.permute.xlu0 %506
      %508 = vrot.lane.b32.xlu0 %v262, 32
      %v509 = vpop.permute.xlu0 %508
      %510 = vrot.lane.b32.xlu0 %v263, 32
      %v511 = vpop.permute.xlu0 %510
      %vm520 = vcmask 31744
      %v521 = vsel %vm520, %v187, %v273
      %v522 = vsel %vm520, %v188, %v275
      %v523 = vsel %vm520, %v189, %v277
      %v524 = vsel %vm520, %v190, %v279
      %v525 = vsel %vm520, %v191, %v281
      %v526 = vsel %vm520, %v192, %v283
      %v527 = vsel %vm520, %v193, %v285
      %v528 = vsel %vm520, %v194, %v287
      %vm529 = vcmask 64512
      %v530 = vsel %vm529, %v521, %v305
      %v531 = vsel %vm529, %v522, %v307
      %v532 = vsel %vm529, %v523, %v309
      %v533 = vsel %vm529, %v524, %v311
      %v534 = vsel %vm529, %v525, %v313
      %v535 = vsel %vm529, %v526, %v315
      %v536 = vsel %vm529, %v527, %v317
      %v537 = vsel %vm529, %v528, %v319
      %vm538 = vcmask 97280
      %v539 = vsel %vm538, %v530, %v337
      %v540 = vsel %vm538, %v531, %v339
      %v541 = vsel %vm538, %v532, %v341
      %v542 = vsel %vm538, %v533, %v343
      %v543 = vsel %vm538, %v534, %v345
      %v544 = vsel %vm538, %v535, %v347
      %v545 = vsel %vm538, %v536, %v349
      %v546 = vsel %vm538, %v537, %v351
      %vm547 = vcmask 130048
      %v548 = vsel %vm547, %v539, %v369
      %v549 = vsel %vm547, %v540, %v371
      %v550 = vsel %vm547, %v541, %v373
      %v551 = vsel %vm547, %v542, %v375
      %v552 = vsel %vm547, %v543, %v377
      %v553 = vsel %vm547, %v544, %v379
      %v554 = vsel %vm547, %v545, %v381
      %v555 = vsel %vm547, %v546, %v383
      %vm556 = vcmask 162816
      %v557 = vsel %vm556, %v548, %v401
      %v558 = vsel %vm556, %v549, %v403
      %v559 = vsel %vm556, %v550, %v405
      %v560 = vsel %vm556, %v551, %v407
      %v561 = vsel %vm556, %v552, %v409
      %v562 = vsel %vm556, %v553, %v411
      %v563 = vsel %vm556, %v554, %v413
      %v564 = vsel %vm556, %v555, %v415
      %vm565 = vcmask 195584
      %v566 = vsel %vm565, %v557, %v433
      %v567 = vsel %vm565, %v558, %v435
      %v568 = vsel %vm565, %v559, %v437
      %v569 = vsel %vm565, %v560, %v439
      %v570 = vsel %vm565, %v561, %v441
      %v571 = vsel %vm565, %v562, %v443
      %v572 = vsel %vm565, %v563, %v445
      %v573 = vsel %vm565, %v564, %v447
      %vm574 = vcmask 228352
      %v575 = vsel %vm574, %v566, %v465
      %v576 = vsel %vm574, %v567, %v467
      %v577 = vsel %vm574, %v568, %v469
      %v578 = vsel %vm574, %v569, %v471
      %v579 = vsel %vm574, %v570, %v473
      %v580 = vsel %vm574, %v571, %v475
      %v581 = vsel %vm574, %v572, %v477
      %v582 = vsel %vm574, %v573, %v479
      %vm583 = vcmask 261120
      %v584 = vsel %vm583, %v575, %v497
      %v585 = vsel %vm583, %v576, %v499
      %v586 = vsel %vm583, %v577, %v501
      %v587 = vsel %vm583, %v578, %v503
      %v588 = vsel %vm583, %v579, %v505
      %v589 = vsel %vm583, %v580, %v507
      %v590 = vsel %vm583, %v581, %v509
      %v591 = vsel %vm583, %v582, %v511
      %v592 = vld [vmem:[%s1] sm:$0xff]
      %v593 = vld [vmem:[%s1 + $0x8] sm:$0xff]
      %v594 = vld [vmem:[%s1 + $0x10] sm:$0xff]
      %v595 = vld [vmem:[%s1 + $0x18] sm:$0xff]
      %v596 = vld [vmem:[%s1 + $0x20] sm:$0xf]
      %vm597 = vcmask 293888
      %v599 = vsel %vm597, %v584, 0
      %v602 = vsel %vm597, %v585, 0
      %v605 = vsel %vm597, %v586, 0
      %v608 = vsel %vm597, %v587, 0
      %v611 = vsel %vm597, %v588, 0
      %v614 = vsel %vm597, %v589, 0
      %v617 = vsel %vm597, %v590, 0
      %v620 = vsel %vm597, %v591, 0
      %vm622 = vcmask 1043456
      %v624 = vsel %vm622, %v596, 0
      %626 = vmatprep.subr.mxu0 0.0
      %627 = vmatpush1.msra.mxu0 %v592
      %628 = vmatprep.subr.mxu0 0.0
      %629 = vmatpush1.msra.mxu0 %v593
      %630 = vmatprep.subr.mxu0 0.0
      %631 = vmatpush1.msra.mxu0 %v594
      %632 = vmatprep.subr.mxu0 0.0
      %633 = vmatpush1.msra.mxu0 %v595
      %634 = vmatprep.subr.mxu0 0.0
      %635 = vmatpush1.msra.mxu0 %v624
      %636 = vmatprep.subr.mxu0 0.0
      %637 = vmatpush1.msra.mxu0 0.0
      %638 = vmatprep.subr.mxu0 0.0
      %639 = vmatpush1.msra.mxu0 0.0
      %640 = vmatprep.subr.mxu0 0.0
      %641 = vmatpush1.msra.mxu0 0.0
      %642 = vmatprep.subr.mxu0 0.0
      %643 = vmatpush1.msra.mxu0 0.0
      %644 = vmatprep.subr.mxu0 0.0
      %645 = vmatpush1.msra.mxu0 0.0
      %646 = vmatprep.subr.mxu0 0.0
      %647 = vmatpush1.msra.mxu0 0.0
      %648 = vmatprep.subr.mxu0 0.0
      %649 = vmatpush1.msra.mxu0 0.0
      %650 = vmatprep.subr.mxu0 0.0
      %651 = vmatpush1.msra.mxu0 0.0
      %652 = vmatprep.subr.mxu0 0.0
      %653 = vmatpush1.msra.mxu0 0.0
      %654 = vmatprep.subr.mxu0 0.0
      %655 = vmatpush1.msra.mxu0 0.0
      %656 = vmatprep.subr.mxu0 0.0
      %657 = vmatpush1.msra.mxu0 0.0
      %658 = vmatprep.subr.mxu0 0.0
      %659 = vmatpush1.msra.mxu0 0.0
      %660 = vmatprep.subr.mxu0 0.0
      %661 = vmatpush1.msra.mxu0 0.0
      %662 = vmatprep.subr.mxu0 0.0
      %663 = vmatpush1.msra.mxu0 0.0
      %664 = vmatprep.subr.mxu0 0.0
      %665 = vmatpush1.msra.mxu0 0.0
      %666 = vmatprep.subr.mxu0 0.0
      %667 = vmatpush1.msra.mxu0 0.0
      %668 = vmatprep.subr.mxu0 0.0
      %669 = vmatpush1.msra.mxu0 0.0
      %670 = vmatprep.subr.mxu0 0.0
      %671 = vmatpush1.msra.mxu0 0.0
      %672 = vmatprep.subr.mxu0 0.0
      %673 = vmatpush1.msra.mxu0 0.0
      %674 = vmatprep.subr.mxu0 0.0
      %675 = vmatpush1.msra.mxu0 0.0
      %676 = vmatprep.subr.mxu0 0.0
      %677 = vmatpush1.msra.mxu0 0.0
      %678 = vmatprep.subr.mxu0 0.0
      %679 = vmatpush1.msra.mxu0 0.0
      %680 = vmatprep.subr.mxu0 0.0
      %681 = vmatpush1.msra.mxu0 0.0
      %682 = vmatprep.subr.mxu0 0.0
      %683 = vmatpush1.msra.mxu0 0.0
      %684 = vmatprep.subr.mxu0 0.0
      %685 = vmatpush1.msra.mxu0 0.0
      %686 = vmatprep.subr.mxu0 0.0
      %687 = vmatpush1.msra.mxu0 0.0
      %688 = vmatprep.subr.mxu0 0.0
      %689 = vmatpush1.msra.mxu0 0.0
      %690 = vmatprep.mubr.f32.mxu0 0.0
      %691 = vmatmul.mubr.f32.gmra.mrb[0].mxu0 %v599
      %v692 = vpop.f32.mrb[0].mxu0
      %v693 = vadd.f32 0.0, %v692
      %v694 = vpop.f32.mrb[0].mxu0
      %695 = vmatprep.mubr.f32.mxu0 0.0
      %696 = vmatmul.mubr.f32.gmra.mrb[0].mxu0 %v602
      %v697 = vpop.f32.mrb[0].mxu0
      %v698 = vadd.f32 0.0, %v697
      %v699 = vpop.f32.mrb[0].mxu0
      %700 = vmatprep.mubr.f32.mxu0 0.0
      %701 = vmatmul.mubr.f32.gmra.mrb[0].mxu0 %v605
      %v702 = vpop.f32.mrb[0].mxu0
      %v703 = vadd.f32 0.0, %v702
      %v704 = vpop.f32.mrb[0].mxu0
      %705 = vmatprep.mubr.f32.mxu0 0.0
      %706 = vmatmul.mubr.f32.gmra.mrb[0].mxu0 %v608
      %v707 = vpop.f32.mrb[0].mxu0
      %v708 = vadd.f32 0.0, %v707
      %v709 = vpop.f32.mrb[0].mxu0
      %710 = vmatprep.mubr.f32.mxu0 0.0
      %711 = vmatmul.mubr.f32.gmra.mrb[0].mxu0 %v611
      %v712 = vpop.f32.mrb[0].mxu0
      %v713 = vadd.f32 0.0, %v712
      %v714 = vpop.f32.mrb[0].mxu0
      %715 = vmatprep.mubr.f32.mxu0 0.0
      %716 = vmatmul.mubr.f32.gmra.mrb[0].mxu0 %v614
      %v717 = vpop.f32.mrb[0].mxu0
      %v718 = vadd.f32 0.0, %v717
      %v719 = vpop.f32.mrb[0].mxu0
      %720 = vmatprep.mubr.f32.mxu0 0.0
      %721 = vmatmul.mubr.f32.gmra.mrb[0].mxu0 %v617
      %v722 = vpop.f32.mrb[0].mxu0
      %v723 = vadd.f32 0.0, %v722
      %v724 = vpop.f32.mrb[0].mxu0
      %725 = vmatprep.mubr.f32.mxu0 0.0
      %726 = vmatmul.mubr.f32.gmra.mrb[0].mxu0 %v620
      %v727 = vpop.f32.mrb[0].mxu0
      %v728 = vadd.f32 0.0, %v727
      %v729 = vpop.f32.mrb[0].mxu0
      %730 = vdwg.mxu0
      %v731 = vsel %vm529, %v693, 0.0
      %v732 = vsel %vm529, %v698, 0.0
      %v733 = vadd.f32 %v731, %v732
      %v734 = vsel %vm529, %v703, 0.0
      %v735 = vadd.f32 %v733, %v734
      %v736 = vsel %vm529, %v708, 0.0
      %v737 = vadd.f32 %v735, %v736
      %v738 = vsel %vm529, %v713, 0.0
      %v739 = vadd.f32 %v737, %v738
      %v740 = vsel %vm529, %v718, 0.0
      %v741 = vadd.f32 %v739, %v740
      %v742 = vsel %vm529, %v723, 0.0
      %v743 = vadd.f32 %v741, %v742
      %v744 = vsel %vm529, %v728, 0.0
      %v745 = vadd.f32 %v743, %v744
      %v746 = vrot.slane %v745, 4
      %v747 = vadd.f32 %v745, %v746
      %v748 = vrot.slane %v747, 2
      %v749 = vadd.f32 %v747, %v748
      %v750 = vrot.slane %v749, 1
      %v751 = vadd.f32 %v749, %v750
      %vm752 = vcmask 57344
      %753 = vst.msk [vmem:[%s186] sm:$0x1] %vm752, %v751
      %v754 = vmul.f32 %v693, %v693
      %v755 = vmul.f32 %v698, %v698
      %v756 = vmul.f32 %v703, %v703
      %v757 = vmul.f32 %v708, %v708
      %v758 = vmul.f32 %v713, %v713
      %v759 = vmul.f32 %v718, %v718
      %v760 = vmul.f32 %v723, %v723
      %v761 = vmul.f32 %v728, %v728
      %v762 = vsel %vm529, %v754, 0.0
      %v763 = vsel %vm529, %v755, 0.0
      %v764 = vadd.f32 %v762, %v763
      %v765 = vsel %vm529, %v756, 0.0
      %v766 = vadd.f32 %v764, %v765
      %v767 = vsel %vm529, %v757, 0.0
      %v768 = vadd.f32 %v766, %v767
      %v769 = vsel %vm529, %v758, 0.0
      %v770 = vadd.f32 %v768, %v769
      %v771 = vsel %vm529, %v759, 0.0
      %v772 = vadd.f32 %v770, %v771
      %v773 = vsel %vm529, %v760, 0.0
      %v774 = vadd.f32 %v772, %v773
      %v775 = vsel %vm529, %v761, 0.0
      %v776 = vadd.f32 %v774, %v775
      %v777 = vrot.slane %v776, 4
      %v778 = vadd.f32 %v776, %v777
      %v779 = vrot.slane %v778, 2
      %v780 = vadd.f32 %v778, %v779
      %v781 = vrot.slane %v780, 1
      %v782 = vadd.f32 %v780, %v781
      %783 = vst.msk [vmem:[%s186 + $0x1] sm:$0x1] %vm752, %v782
      %784 = vst.msk [vmem:[%s182] sm:$0xff] %vm529, 0.0
      %vm785 = vcmask 58368
      %786 = vst.msk [vmem:[%s182 + $0x8] sm:$0x3] %vm785, 0.0
      %787 = vst.msk [vmem:[%s182 + $0x10] sm:$0xff] %vm529, 0.0
      %788 = vst.msk [vmem:[%s182 + $0x18] sm:$0x3] %vm785, 0.0
      %789 = vst.msk [vmem:[%s182 + $0x20] sm:$0xff] %vm529, 0.0
      %790 = vst.msk [vmem:[%s182 + $0x28] sm:$0x3] %vm785, 0.0
      %791 = vst.msk [vmem:[%s182 + $0x30] sm:$0xff] %vm529, 0.0
      %792 = vst.msk [vmem:[%s182 + $0x38] sm:$0x3] %vm785, 0.0
      %793 = vst.msk [vmem:[%s182 + $0x40] sm:$0xff] %vm529, 0.0
      %794 = vst.msk [vmem:[%s182 + $0x48] sm:$0x3] %vm785, 0.0
      %795 = vst.msk [vmem:[%s182 + $0x50] sm:$0xff] %vm529, 0.0
      %796 = vst.msk [vmem:[%s182 + $0x58] sm:$0x3] %vm785, 0.0
      %797 = vst.msk [vmem:[%s182 + $0x60] sm:$0xff] %vm529, 0.0
      %798 = vst.msk [vmem:[%s182 + $0x68] sm:$0x3] %vm785, 0.0
      %799 = vst.msk [vmem:[%s182 + $0x70] sm:$0xff] %vm529, 0.0
      %800 = vst.msk [vmem:[%s182 + $0x78] sm:$0x3] %vm785, 0.0
      %801 = vst.msk [vmem:[%s182 + $0x80] sm:$0xff] %vm529, 0.0
      %802 = vst.msk [vmem:[%s182 + $0x88] sm:$0x3] %vm785, 0.0
      %803 = vst.msk [vmem:[%s182 + $0x90] sm:$0xff] %vm529, 0.0
      %804 = vst.msk [vmem:[%s182 + $0x98] sm:$0x3] %vm785, 0.0
      %s805 = scalar_lea.vmem %s182, 16
      %806 = vst.msk [vmem:[%s805 + $0x1] sm:$0xff] %vm529, %v693
      %807 = vst.msk [vmem:[%s805 + $0x11] sm:$0xff] %vm529, %v698
      %808 = vst.msk [vmem:[%s805 + $0x21] sm:$0xff] %vm529, %v703
      %809 = vst.msk [vmem:[%s805 + $0x31] sm:$0xff] %vm529, %v708
      %810 = vst.msk [vmem:[%s805 + $0x41] sm:$0xff] %vm529, %v713
      %811 = vst.msk [vmem:[%s805 + $0x51] sm:$0xff] %vm529, %v718
      %812 = vst.msk [vmem:[%s805 + $0x61] sm:$0xff] %vm529, %v723
      %813 = vst.msk [vmem:[%s805 + $0x71] sm:$0xff] %vm529, %v728
      %p814 = scmp.lt.s32.totalorder %s15, 1
      %s815 = scalar_select %p814, %s15, 1
      %s816 = smul.addr %s815, 20
      %s817 = smul.addr %s816, 8
      %s818 = scalar_lea.vmem %s2, %s817
      %p819 = scmp.lt.s32.totalorder %s15, 1
      %s820 = scalar_select %p819, %s15, 1
      %s821 = smul.addr %s820, 2
      %s822 = scalar_lea.vmem %s3, %s821
      // Predicated region
      $region29: #{residual_block_forward.4} parent=27 // pred_check
        %p823 = pneg %p80
      $region30: #{residual_block_forward.4} parent=27 // pred_check_branch
        %825 = sbr.rel (%p823) target = $region32
      $region31: #{residual_block_forward.4} parent=27 // pred_region
        _
      $region32: #{residual_block_forward.4} parent=27 // pred_fallthru
        _
      // Predicated region
      $region33: #{residual_block_forward.4} parent=27 // pred_check
        %p826 = pneg %p106
      $region34: #{residual_block_forward.4} parent=27 // pred_check_branch
        %828 = sbr.rel (%p826) target = $region36
      $region35: #{residual_block_forward.4} parent=27 // pred_region
        _
      $region36: #{residual_block_forward.4} parent=27 // pred_fallthru
        _
    $region28: #{residual_block_forward.4} parent=5 // pred_fallthru
      _
    %p829 = scmp.le.s32.totalorder 2, %s10
    // Predicated region
    $region37: #{residual_block_forward.4} parent=5 // pred_check
      %p830 = pneg %p829
    $region38: #{residual_block_forward.4} parent=5 // pred_check_branch
      %832 = sbr.rel (%p830) target = $region40
    $region39: #{residual_block_forward.4} parent=5 // pred_region
      %s833 = ssub.s32 %s10, 2
      // Predicated region
      $region41: #{residual_block_forward.4} parent=39 // pred_check
        %p834 = pneg %p86
      $region42: #{residual_block_forward.4} parent=39 // pred_check_branch
        %836 = sbr.rel (%p834) target = $region44
      $region43: #{residual_block_forward.4} parent=39 // pred_region
        %p837 = scmp.lt.s32.totalorder %s16, 1
        %s838 = scalar_select %p837, %s16, 1
        %s839 = smul.addr %s838, 20
        %s840 = smul.addr %s839, 8
        %s841 = scalar_lea.vmem %s2, %s840
      $region44: #{residual_block_forward.4} parent=39 // pred_fallthru
        _
      // Predicated region
      $region45: #{residual_block_forward.4} parent=39 // pred_check
        %p842 = pneg %p112
      $region46: #{residual_block_forward.4} parent=39 // pred_check_branch
        %844 = sbr.rel (%p842) target = $region48
      $region47: #{residual_block_forward.4} parent=39 // pred_region
        %p845 = scmp.lt.s32.totalorder %s16, 1
        %s846 = scalar_select %p845, %s16, 1
        %s847 = smul.addr %s846, 2
        %s848 = scalar_lea.vmem %s3, %s847
      $region48: #{residual_block_forward.4} parent=39 // pred_fallthru
        _
    $region40: #{residual_block_forward.4} parent=5 // pred_fallthru
      _
  $region6: #{residual_block_forward.4} parent=0 // loop_footer
    %s14 = sadd.s32 1, %s10
  $region7: #{residual_block_forward.4} parent=0 // loop_footer_branch
    %9 = sbr.rel target = $region3
  $region8: #{residual_block_forward.4} parent=0 // loop_exit
    _

// kernel: residual_block_forward.7
$region0: #{residual_block_forward.7}
  #allocation0 [shape = 'u32[]', space=smem, size = 0x4, offset = 0x4, fixed_abs, tag = 'smem constant byte address 0x4 - core index']
  #allocation1 [shape = 'u32[144,128]{1,0:T(1,128)}', space=vmem, size = 0x12000, scoped, tag = 'internal scratch']
  %s0 = inlined_call_operand.vmem [shape: f32[8,128], index: 0, kind: input, shape index: {}]
  %s1 = inlined_call_operand.vmem [shape: f32[8,128], index: 1, kind: input, shape index: {}]
  %s2 = inlined_call_operand.vmem [shape: f32[1,128], index: 2, kind: input, shape index: {}]
  %s3 = inlined_call_operand.vmem [shape: f32[1,128], index: 3, kind: input, shape index: {}]
  %s4 = inlined_call_operand.vmem [shape: f32[1,128], index: 4, kind: input, shape index: {}]
  %s5 = inlined_call_operand.vmem [shape: f32[1,128], index: 5, kind: input, shape index: {}]
  %s6 = inlined_call_operand.vmem [shape: f32[8,128], index: 6, kind: output, shape index: {}]
  %s7 = sld [smem:[#allocation0]]
  $region34: #{residual_block_forward.7} parent=0
    _
  %s9 = ssub.s32 1, %s7
  %s10 = scalar_select 0, %s9, %s7
  // Predicated region
  $region2: #{residual_block_forward.7} parent=0 // pred_check
    _
  $region3: #{residual_block_forward.7} parent=0 // pred_check_branch
    %12 = sbr.rel (0) target = $region5
  $region4: #{residual_block_forward.7} parent=0 // pred_region
    _
  $region5: #{residual_block_forward.7} parent=0 // pred_fallthru
    _
  // Predicated region
  $region6: #{residual_block_forward.7} parent=0 // pred_check
    _
  $region7: #{residual_block_forward.7} parent=0 // pred_check_branch
    %14 = sbr.rel (0) target = $region9
  $region8: #{residual_block_forward.7} parent=0 // pred_region
    _
  $region9: #{residual_block_forward.7} parent=0 // pred_fallthru
    _
  // Predicated region
  $region10: #{residual_block_forward.7} parent=0 // pred_check
    _
  $region11: #{residual_block_forward.7} parent=0 // pred_check_branch
    %16 = sbr.rel (0) target = $region13
  $region12: #{residual_block_forward.7} parent=0 // pred_region
    _
  $region13: #{residual_block_forward.7} parent=0 // pred_fallthru
    _
  // Predicated region
  $region14: #{residual_block_forward.7} parent=0 // pred_check
    _
  $region15: #{residual_block_forward.7} parent=0 // pred_check_branch
    %18 = sbr.rel (0) target = $region17
  $region16: #{residual_block_forward.7} parent=0 // pred_region
    _
  $region17: #{residual_block_forward.7} parent=0 // pred_fallthru
    _
  // Predicated region
  $region18: #{residual_block_forward.7} parent=0 // pred_check
    _
  $region19: #{residual_block_forward.7} parent=0 // pred_check_branch
    %20 = sbr.rel (0) target = $region21
  $region20: #{residual_block_forward.7} parent=0 // pred_region
    _
  $region21: #{residual_block_forward.7} parent=0 // pred_fallthru
    _
  // Predicated region
  $region22: #{residual_block_forward.7} parent=0 // pred_check
    _
  $region23: #{residual_block_forward.7} parent=0 // pred_check_branch
    %22 = sbr.rel (0) target = $region25
  $region24: #{residual_block_forward.7} parent=0 // pred_region
    _
  $region25: #{residual_block_forward.7} parent=0 // pred_fallthru
    _
  %v23 = vld [vmem:[%s0] sm:$0xff]
  %v24 = vld [vmem:[%s2] sm:$0x1]
  %v26 = vlaneseq
  %v27 = vshrl.u32 %v26, 7
  %v28 = vsub.s32 0, %v27
  %v29 = vrot.slane %v24, %v28
  %v31 = vmul.f32 %v23, %v29
  %v32 = vld [vmem:[%s3] sm:$0x1]
  %v34 = vlaneseq
  %v35 = vshrl.u32 %v34, 7
  %v36 = vsub.s32 0, %v35
  %v37 = vrot.slane %v32, %v36
  %v39 = vadd.f32 %v31, %v37
  %v40 = vld [vmem:[%s1] sm:$0xff]
  %v41 = vld [vmem:[%s4] sm:$0x1]
  %v43 = vlaneseq
  %v44 = vshrl.u32 %v43, 7
  %v45 = vsub.s32 0, %v44
  %v46 = vrot.slane %v41, %v45
  %v48 = vmul.f32 %v40, %v46
  %v49 = vld [vmem:[%s5] sm:$0x1]
  %v51 = vlaneseq
  %v52 = vshrl.u32 %v51, 7
  %v53 = vsub.s32 0, %v52
  %v54 = vrot.slane %v49, %v53
  %v56 = vadd.f32 %v48, %v54
  %v57 = vadd.f32 %v39, %v56
  %v58 = vmax.f32 %v57, 0.0
  %59 = vst [vmem:[%s6] sm:$0xff] %v58
  // Predicated region
  $region26: #{residual_block_forward.7} parent=0 // pred_check
    _
  $region27: #{residual_block_forward.7} parent=0 // pred_check_branch
    %61 = sbr.rel (0) target = $region29
  $region28: #{residual_block_forward.7} parent=0 // pred_region
    _
  $region29: #{residual_block_forward.7} parent=0 // pred_fallthru
    _
  // Predicated region
  $region30: #{residual_block_forward.7} parent=0 // pred_check
    _
  $region31: #{residual_block_forward.7} parent=0 // pred_check_branch
    %63 = sbr.rel (0) target = $region33
  $region32: #{residual_block_forward.7} parent=0 // pred_region
    _
  $region33: #{residual_block_forward.7} parent=0 // pred_fallthru
    _

// kernel: residual_block_forward.5
$region0: #{residual_block_forward.5}
  #allocation0 [shape = 'u32[]', space=smem, size = 0x4, offset = 0x4, fixed_abs, tag = 'smem constant byte address 0x4 - core index']
  #allocation1 [shape = 'u32[144,128]{1,0:T(1,128)}', space=vmem, size = 0x12000, scoped, tag = 'internal scratch']
  %s0 = inlined_call_operand.vmem [shape: f32[2,10,10,8], index: 0, kind: input, shape index: {}]
  %s1 = inlined_call_operand.vmem [shape: f32[72,8], index: 1, kind: input, shape index: {}]
  %s2 = inlined_call_operand.vmem [shape: f32[1,8], index: 2, kind: input, shape index: {}]
  %s3 = inlined_call_operand.vmem [shape: f32[1,8], index: 3, kind: input, shape index: {}]
  %s4 = inlined_call_operand.vmem [shape: f32[2,8,8,8], index: 4, kind: output, shape index: {0}]
  %s5 = inlined_call_operand.vmem [shape: f32[2,2,8], index: 5, kind: output, shape index: {1}]
  %6 = xla_tuple %s4, %s5
  %s7 = sld [smem:[#allocation0]]
  $region57: #{residual_block_forward.5} parent=0
    _
  %s9 = ssub.s32 1, %s7
  %s10 = scalar_select 0, %s9, %s7
  loop: start=0, step=1, limit=4
  $region2: #{residual_block_forward.5} parent=0 // loop_pre_header
    _
  $region3: #{residual_block_forward.5} parent=0 // loop_header
    %s12 = sphi 0, %s16
    %p13 = scmp.ge.s32.totalorder %s12, 4
    %s22 = sphi 0, %s24
    %s25 = sphi 0, %s22
    %s26 = sphi 0, %s25
    %s42 = sphi 0, %s26
    %s46 = sphi 0, %s46
    %s48 = sphi 0, %s46
    %s49 = sphi 0, %s48
    %s63 = sphi 0, %s49
    %s67 = sphi 0, %s67
    %s69 = sphi 0, %s67
    %s70 = sphi 0, %s69
    %s84 = sphi 0, %s70
    %s88 = sphi 0, %s88
    %s90 = sphi 0, %s88
    %s91 = sphi 0, %s90
    %s105 = sphi 0, %s91
    %s111 = sphi 0, %s113
    %s114 = sphi 0, %s111
    %s115 = sphi 0, %s114
    %s131 = sphi 0, %s115
    %s137 = sphi 0, %s139
    %s140 = sphi 0, %s137
    %s141 = sphi 0, %s140
    %s157 = sphi 0, %s141
  $region4: #{residual_block_forward.5} parent=0 // loop_header_branch
    %15 = sbr.rel (%p13) target = $region8
  $region5: #{residual_block_forward.5} parent=0 // loop_body
    %s17 = ssub.s32 %s12, 1
    %s18 = ssub.s32 %s12, 2
    %s19 = sadd.s32 %s12, 1
    %s20 = ssub.s32 %s12, %s19
    %p21 = scmp.eq.s32.totalorder %s20, 0
    %s23 = sadd.s32 %s22, 1
    %s24 = scalar_select %p21, %s22, %s23
    %p27 = pneg %p21
    %p28 = scmp.eq.s32.totalorder %s12, 1
    %p29 = por %p27, %p28
    %p30 = scmp.ne.s32.totalorder %s22, %s25
    %p31 = scmp.eq.s32.totalorder %s12, 0
    %p32 = por %p30, %p31
    %p33 = scmp.ne.s32.totalorder %s22, %s25
    %p34 = scmp.eq.s32.totalorder %s17, 1
    %p35 = por %p33, %p34
    %p36 = scmp.ne.s32.totalorder %s25, %s26
    %p37 = scmp.eq.s32.totalorder %s17, 0
    %p38 = por %p36, %p37
    %p39 = scmp.ne.s32.totalorder %s25, %s26
    %p40 = scmp.eq.s32.totalorder %s18, 1
    %p41 = por %p39, %p40
    %p43 = scmp.ne.s32.totalorder %s26, %s42
    %p44 = scmp.eq.s32.totalorder %s18, 0
    %p45 = por %p43, %p44
    %s47 = sadd.s32 %s46, 1
    %p50 = scmp.eq.s32.totalorder %s12, 1
    %p51 = scmp.ne.s32.totalorder %s46, %s48
    %p52 = scmp.eq.s32.totalorder %s12, 0
    %p53 = por %p51, %p52
    %p54 = scmp.ne.s32.totalorder %s46, %s48
    %p55 = scmp.eq.s32.totalorder %s17, 1
    %p56 = por %p54, %p55
    %p57 = scmp.ne.s32.totalorder %s48, %s49
    %p58 = scmp.eq.s32.totalorder %s17, 0
    %p59 = por %p57, %p58
    %p60 = scmp.ne.s32.totalorder %s48, %s49
    %p61 = scmp.eq.s32.totalorder %s18, 1
    %p62 = por %p60, %p61
    %p64 = scmp.ne.s32.totalorder %s49, %s63
    %p65 = scmp.eq.s32.totalorder %s18, 0
    %p66 = por %p64, %p65
    %s68 = sadd.s32 %s67, 1
    %p71 = scmp.eq.s32.totalorder %s12, 1
    %p72 = scmp.ne.s32.totalorder %s67, %s69
    %p73 = scmp.eq.s32.totalorder %s12, 0
    %p74 = por %p72, %p73
    %p75 = scmp.ne.s32.totalorder %s67, %s69
    %p76 = scmp.eq.s32.totalorder %s17, 1
    %p77 = por %p75, %p76
    %p78 = scmp.ne.s32.totalorder %s69, %s70
    %p79 = scmp.eq.s32.totalorder %s17, 0
    %p80 = por %p78, %p79
    %p81 = scmp.ne.s32.totalorder %s69, %s70
    %p82 = scmp.eq.s32.totalorder %s18, 1
    %p83 = por %p81, %p82
    %p85 = scmp.ne.s32.totalorder %s70, %s84
    %p86 = scmp.eq.s32.totalorder %s18, 0
    %p87 = por %p85, %p86
    %s89 = sadd.s32 %s88, 1
    %p92 = scmp.eq.s32.totalorder %s12, 1
    %p93 = scmp.ne.s32.totalorder %s88, %s90
    %p94 = scmp.eq.s32.totalorder %s12, 0
    %p95 = por %p93, %p94
    %p96 = scmp.ne.s32.totalorder %s88, %s90
    %p97 = scmp.eq.s32.totalorder %s17, 1
    %p98 = por %p96, %p97
    %p99 = scmp.ne.s32.totalorder %s90, %s91
    %p100 = scmp.eq.s32.totalorder %s17, 0
    %p101 = por %p99, %p100
    %p102 = scmp.ne.s32.totalorder %s90, %s91
    %p103 = scmp.eq.s32.totalorder %s18, 1
    %p104 = por %p102, %p103
    %p106 = scmp.ne.s32.totalorder %s91, %s105
    %p107 = scmp.eq.s32.totalorder %s18, 0
    %p108 = por %p106, %p107
    %s109 = ssub.s32 %s12, %s19
    %p110 = scmp.eq.s32.totalorder %s109, 0
    %s112 = sadd.s32 %s111, 1
    %s113 = scalar_select %p110, %s111, %s112
    %p116 = pneg %p110
    %p117 = scmp.eq.s32.totalorder %s12, 1
    %p118 = por %p116, %p117
    %p119 = scmp.ne.s32.totalorder %s111, %s114
    %p120 = scmp.eq.s32.totalorder %s12, 0
    %p121 = por %p119, %p120
    %p122 = scmp.ne.s32.totalorder %s111, %s114
    %p123 = scmp.eq.s32.totalorder %s17, 1
    %p124 = por %p122, %p123
    %p125 = scmp.ne.s32.totalorder %s114, %s115
    %p126 = scmp.eq.s32.totalorder %s17, 0
    %p127 = por %p125, %p126
    %p128 = scmp.ne.s32.totalorder %s114, %s115
    %p129 = scmp.eq.s32.totalorder %s18, 1
    %p130 = por %p128, %p129
    %p132 = scmp.ne.s32.totalorder %s115, %s131
    %p133 = scmp.eq.s32.totalorder %s18, 0
    %p134 = por %p132, %p133
    %s135 = ssub.s32 %s12, %s19
    %p136 = scmp.eq.s32.totalorder %s135, 0
    %s138 = sadd.s32 %s137, 1
    %s139 = scalar_select %p136, %s137, %s138
    %p142 = pneg %p136
    %p143 = scmp.eq.s32.totalorder %s12, 1
    %p144 = por %p142, %p143
    %p145 = scmp.ne.s32.totalorder %s137, %s140
    %p146 = scmp.eq.s32.totalorder %s12, 0
    %p147 = por %p145, %p146
    %p148 = scmp.ne.s32.totalorder %s137, %s140
    %p149 = scmp.eq.s32.totalorder %s17, 1
    %p150 = por %p148, %p149
    %p151 = scmp.ne.s32.totalorder %s140, %s141
    %p152 = scmp.eq.s32.totalorder %s17, 0
    %p153 = por %p151, %p152
    %p154 = scmp.ne.s32.totalorder %s140, %s141
    %p155 = scmp.eq.s32.totalorder %s18, 1
    %p156 = por %p154, %p155
    %p158 = scmp.ne.s32.totalorder %s141, %s157
    %p159 = scmp.eq.s32.totalorder %s18, 0
    %p160 = por %p158, %p159
    %p161 = scmp.le.s32.totalorder 1, %s12
    %p162 = scmp.lt.s32.totalorder %s12, 3
    %p163 = pnand %p161, %p162
    %p164 = pneg %p163
    // Predicated region
    $region9: #{residual_block_forward.5} parent=5 // pred_check
      _
    $region10: #{residual_block_forward.5} parent=5 // pred_check_branch
      %166 = sbr.rel (%p163) target = $region12
    $region11: #{residual_block_forward.5} parent=5 // pred_region
      %s167 = ssub.s32 %s12, 1
      // Predicated region
      $region13: #{residual_block_forward.5} parent=11 // pred_check
        %p168 = pneg %p59
      $region14: #{residual_block_forward.5} parent=11 // pred_check_branch
        %170 = sbr.rel (%p168) target = $region16
      $region15: #{residual_block_forward.5} parent=11 // pred_region
        _
      $region16: #{residual_block_forward.5} parent=11 // pred_fallthru
        _
      // Predicated region
      $region17: #{residual_block_forward.5} parent=11 // pred_check
        %p171 = pneg %p80
      $region18: #{residual_block_forward.5} parent=11 // pred_check_branch
        %173 = sbr.rel (%p171) target = $region20
      $region19: #{residual_block_forward.5} parent=11 // pred_region
        _
      $region20: #{residual_block_forward.5} parent=11 // pred_fallthru
        _
      // Predicated region
      $region21: #{residual_block_forward.5} parent=11 // pred_check
        %p174 = pneg %p101
      $region22: #{residual_block_forward.5} parent=11 // pred_check_branch
        %176 = sbr.rel (%p174) target = $region24
      $region23: #{residual_block_forward.5} parent=11 // pred_region
        _
      $region24: #{residual_block_forward.5} parent=11 // pred_fallthru
        _
    $region12: #{residual_block_forward.5} parent=5 // pred_fallthru
      _
    %p177 = scmp.lt.s32.totalorder %s12, 2
    // Predicated region
    $region25: #{residual_block_forward.5} parent=5 // pred_check
      %p178 = pneg %p177
    $region26: #{residual_block_forward.5} parent=5 // pred_check_branch
      %180 = sbr.rel (%p178) target = $region28
    $region27: #{residual_block_forward.5} parent=5 // pred_region
      // Predicated region
      $region29: #{residual_block_forward.5} parent=27 // pred_check
        %p181 = pneg %p32
      $region30: #{residual_block_forward.5} parent=27 // pred_check_branch
        %183 = sbr.rel (%p181) target = $region32
      $region31: #{residual_block_forward.5} parent=27 // pred_region
        %p184 = scmp.lt.s32.totalorder %s12, 1
        %s185 = scalar_select %p184, %s12, 1
        %s186 = smul.addr %s185, 20
        %s187 = smul.addr %s186, 8
        %s188 = scalar_lea.vmem %s0, %s187
      $region32: #{residual_block_forward.5} parent=27 // pred_fallthru
        _
    $region28: #{residual_block_forward.5} parent=5 // pred_fallthru
      _
    %p189 = scmp.le.s32.totalorder 1, %s12
    %p190 = scmp.lt.s32.totalorder %s12, 3
    %p191 = pnand %p189, %p190
    %p192 = pneg %p191
    // Predicated region
    $region33: #{residual_block_forward.5} parent=5 // pred_check
      _
    $region34: #{residual_block_forward.5} parent=5 // pred_check_branch
      %194 = sbr.rel (%p191) target = $region36
    $region35: #{residual_block_forward.5} parent=5 // pred_region
      %s195 = ssub.s32 %s12, 1
      %p196 = scmp.lt.s32.totalorder %s17, 1
      %s197 = scalar_select %p196, %s17, 1
      %s198 = smul.addr %s197, 20
      %s199 = smul.addr %s198, 8
      %s200 = scalar_lea.vmem %s0, %s199
      %p201 = pneg %p38
      %p202 = pneg %p35
      %p203 = pneg %p59
      %p204 = pneg %p56
      %p205 = pneg %p80
      %p206 = pneg %p77
      %p207 = pneg %p101
      %p208 = pneg %p98
      %p209 = pneg %p127
      %p210 = pneg %p124
      %p211 = scmp.lt.s32.totalorder %s17, 1
      %s212 = scalar_select %p211, %s17, 1
      %s213 = smul.addr %s212, 8
      %s214 = smul.addr %s213, 8
      %s215 = scalar_lea.vmem %s4, %s214
      %p216 = pneg %p153
      %p217 = pneg %p150
      %p218 = scmp.lt.s32.totalorder %s17, 1
      %s219 = scalar_select %p218, %s17, 1
      %s220 = smul.addr %s219, 2
      %s221 = scalar_lea.vmem %s5, %s220
      %p222 = scmp.lt.s32.totalorder %s17, 1
      %s223 = scalar_select %p222, %s17, 1
      %s224 = smul.addr %s223, 20
      %s225 = smul.addr %s224, 8
      %s226 = scalar_lea.vmem %s0, %s225
      %p227 = scmp.lt.s32.totalorder %s17, 1
      %s228 = scalar_select %p227, %s17, 1
      %s229 = smul.addr %s228, 8
      %s230 = smul.addr %s229, 8
      %s231 = scalar_lea.vmem %s4, %s230
      %p232 = scmp.lt.s32.totalorder %s17, 1
      %s233 = scalar_select %p232, %s17, 1
      %s234 = smul.addr %s233, 2
      %s235 = scalar_lea.vmem %s5, %s234
      %v236 = vld [vmem:[%s226] sm:$0xff]
      %v237 = vld [vmem:[%s226 + $0x8] sm:$0x3]
      %v238 = vld [vmem:[%s226 + $0x10] sm:$0xff]
      %v239 = vld [vmem:[%s226 + $0x18] sm:$0x3]
      %v240 = vld [vmem:[%s226 + $0x20] sm:$0xff]
      %v241 = vld [vmem:[%s226 + $0x28] sm:$0x3]
      %v242 = vld [vmem:[%s226 + $0x30] sm:$0xff]
      %v243 = vld [vmem:[%s226 + $0x38] sm:$0x3]
      %v244 = vld [vmem:[%s226 + $0x40] sm:$0xff]
      %v245 = vld [vmem:[%s226 + $0x48] sm:$0x3]
      %v246 = vld [vmem:[%s226 + $0x50] sm:$0xff]
      %v247 = vld [vmem:[%s226 + $0x58] sm:$0x3]
      %v248 = vld [vmem:[%s226 + $0x60] sm:$0xff]
      %v249 = vld [vmem:[%s226 + $0x68] sm:$0x3]
      %v250 = vld [vmem:[%s226 + $0x70] sm:$0xff]
      %v251 = vld [vmem:[%s226 + $0x78] sm:$0x3]
      %v252 = vld [vmem:[%s226 + $0x80] sm:$0xff]
      %v253 = vld [vmem:[%s226 + $0x88] sm:$0x3]
      %v254 = vld [vmem:[%s226 + $0x90] sm:$0xff]
      %v255 = vld [vmem:[%s226 + $0x98] sm:$0x3]
      %v256 = vlaneseq
      %v257 = vshrl.u32 %v256, 7
      %v258 = vadd.s32 %v257, 8
      %vm259 = vcmp.ge.s32.totalorder %v257, 1
      %vm260 = vcmp.ge.s32.totalorder %v258, 1
      %vm261 = vmand 0, %vm259
      %vm262 = vmand 0, %vm260
      %vm263 = vmand 1, %vm259
      %vm264 = vmand 1, %vm260
      %vm265 = vcmp.lt.s32.totalorder %v257, 9
      %vm266 = vcmp.lt.s32.totalorder %v258, 9
      %vm267 = vmand %vm261, %vm265
      %vm268 = vmand %vm262, %vm266
      %vm269 = vmand %vm263, %vm265
      %vm270 = vmand %vm264, %vm266
      %v271 = vld [vmem:[%s2] sm:$0x1]
      %v272 = vld [vmem:[%s3] sm:$0x1]
      %v274 = vlaneseq
      %v275 = vshrl.u32 %v274, 7
      %v276 = vsub.s32 0, %v275
      %v277 = vrot.slane %v271, %v276
      %v279 = vmul.f32 %v236, %v277
      %v280 = vmul.f32 %v237, %v277
      %v281 = vmul.f32 %v238, %v277
      %v282 = vmul.f32 %v239, %v277
      %v283 = vmul.f32 %v240, %v277
      %v284 = vmul.f32 %v241, %v277
      %v285 = vmul.f32 %v242, %v277
      %v286 = vmul.f32 %v243, %v277
      %v287 = vmul.f32 %v244, %v277
      %v288 = vmul.f32 %v245, %v277
      %v289 = vmul.f32 %v246, %v277
      %v290 = vmul.f32 %v247, %v277
      %v291 = vmul.f32 %v248, %v277
      %v292 = vmul.f32 %v249, %v277
      %v293 = vmul.f32 %v250, %v277
      %v294 = vmul.f32 %v251, %v277
      %v295 = vmul.f32 %v252, %v277
      %v296 = vmul.f32 %v253, %v277
      %v297 = vmul.f32 %v254, %v277
      %v298 = vmul.f32 %v255, %v277
      %v300 = vlaneseq
      %v301 = vshrl.u32 %v300, 7
      %v302 = vsub.s32 0, %v301
      %v303 = vrot.slane %v272, %v302
      %v305 = vadd.f32 %v279, %v303
      %v306 = vadd.f32 %v280, %v303
      %v307 = vadd.f32 %v281, %v303
      %v308 = vadd.f32 %v282, %v303
      %v309 = vadd.f32 %v283, %v303
      %v310 = vadd.f32 %v284, %v303
      %v311 = vadd.f32 %v285, %v303
      %v312 = vadd.f32 %v286, %v303
      %v313 = vadd.f32 %v287, %v303
      %v314 = vadd.f32 %v288, %v303
      %v315 = vadd.f32 %v289, %v303
      %v316 = vadd.f32 %v290, %v303
      %v317 = vadd.f32 %v291, %v303
      %v318 = vadd.f32 %v292, %v303
      %v319 = vadd.f32 %v293, %v303
      %v320 = vadd.f32 %v294, %v303
      %v321 = vadd.f32 %v295, %v303
      %v322 = vadd.f32 %v296, %v303
      %v323 = vadd.f32 %v297, %v303
      %v324 = vadd.f32 %v298, %v303
      %v325 = vmax.f32 %v305, 0.0
      %v326 = vmax.f32 %v306, 0.0
      %v327 = vmax.f32 %v307, 0.0
      %v328 = vmax.f32 %v308, 0.0
      %v329 = vmax.f32 %v309, 0.0
      %v330 = vmax.f32 %v310, 0.0
      %v331 = vmax.f32 %v311, 0.0
      %v332 = vmax.f32 %v312, 0.0
      %v333 = vmax.f32 %v313, 0.0
      %v334 = vmax.f32 %v314, 0.0
      %v335 = vmax.f32 %v315, 0.0
      %v336 = vmax.f32 %v316, 0.0
      %v337 = vmax.f32 %v317, 0.0
      %v338 = vmax.f32 %v318, 0.0
      %v339 = vmax.f32 %v319, 0.0
      %v340 = vmax.f32 %v320, 0.0
      %v341 = vmax.f32 %v321, 0.0
      %v342 = vmax.f32 %v322, 0.0
      %v343 = vmax.f32 %v323, 0.0
      %v344 = vmax.f32 %v324, 0.0
      %v345 = vsel %vm267, %v325, 0.0
      %v346 = vsel %vm268, %v326, 0.0
      %v347 = vsel %vm269, %v327, 0.0
      %v348 = vsel %vm270, %v328, 0.0
      %v349 = vsel %vm269, %v329, 0.0
      %v350 = vsel %vm270, %v330, 0.0
      %v351 = vsel %vm269, %v331, 0.0
      %v352 = vsel %vm270, %v332, 0.0
      %v353 = vsel %vm269, %v333, 0.0
      %v354 = vsel %vm270, %v334, 0.0
      %v355 = vsel %vm269, %v335, 0.0
      %v356 = vsel %vm270, %v336, 0.0
      %v357 = vsel %vm269, %v337, 0.0
      %v358 = vsel %vm270, %v338, 0.0
      %v359 = vsel %vm269, %v339, 0.0
      %v360 = vsel %vm270, %v340, 0.0
      %v361 = vsel %vm269, %v341, 0.0
      %v362 = vsel %vm270, %v342, 0.0
      %v363 = vsel %vm267, %v343, 0.0
      %v364 = vsel %vm268, %v344, 0.0
      %vm381 = vcmask 1046528
      %v382 = vrot.slane %v345, 1
      %v383 = vrot.slane %v346, 1
      %v384 = vsel %vm381, %v382, %v383
      %v385 = vrot.slane %v347, 1
      %v386 = vrot.slane %v348, 1
      %v387 = vsel %vm381, %v385, %v386
      %v388 = vrot.slane %v349, 1
      %v389 = vrot.slane %v350, 1
      %v390 = vsel %vm381, %v388, %v389
      %v391 = vrot.slane %v351, 1
      %v392 = vrot.slane %v352, 1
      %v393 = vsel %vm381, %v391, %v392
      %v394 = vrot.slane %v353, 1
      %v395 = vrot.slane %v354, 1
      %v396 = vsel %vm381, %v394, %v395
      %v397 = vrot.slane %v355, 1
      %v398 = vrot.slane %v356, 1
      %v399 = vsel %vm381, %v397, %v398
      %v400 = vrot.slane %v357, 1
      %v401 = vrot.slane %v358, 1
      %v402 = vsel %vm381, %v400, %v401
      %v403 = vrot.slane %v359, 1
      %v404 = vrot.slane %v360, 1
      %v405 = vsel %vm381, %v403, %v404
      %406 = vrot.lane.b32.xlu0 %v384, 8
      %v407 = vpop.permute.xlu0 %406
      %408 = vrot.lane.b32.xlu0 %v387, 8
      %v409 = vpop.permute.xlu0 %408
      %410 = vrot.lane.b32.xlu0 %v390, 8
      %v411 = vpop.permute.xlu0 %410
      %412 = vrot.lane.b32.xlu0 %v393, 8
      %v413 = vpop.permute.xlu0 %412
      %414 = vrot.lane.b32.xlu0 %v396, 8
      %v415 = vpop.permute.xlu0 %414
      %416 = vrot.lane.b32.xlu0 %v399, 8
      %v417 = vpop.permute.xlu0 %416
      %418 = vrot.lane.b32.xlu0 %v402, 8
      %v419 = vpop.permute.xlu0 %418
      %420 = vrot.lane.b32.xlu0 %v405, 8
      %v421 = vpop.permute.xlu0 %420
      %vm430 = vcmask 1045504
      %v431 = vrot.slane %v345, 2
      %v432 = vrot.slane %v346, 2
      %v433 = vsel %vm430, %v431, %v432
      %v434 = vrot.slane %v347, 2
      %v435 = vrot.slane %v348, 2
      %v436 = vsel %vm430, %v434, %v435
      %v437 = vrot.slane %v349, 2
      %v438 = vrot.slane %v350, 2
      %v439 = vsel %vm430, %v437, %v438
      %v440 = vrot.slane %v351, 2
      %v441 = vrot.slane %v352, 2
      %v442 = vsel %vm430, %v440, %v441
      %v443 = vrot.slane %v353, 2
      %v444 = vrot.slane %v354, 2
      %v445 = vsel %vm430, %v443, %v444
      %v446 = vrot.slane %v355, 2
      %v447 = vrot.slane %v356, 2
      %v448 = vsel %vm430, %v446, %v447
      %v449 = vrot.slane %v357, 2
      %v450 = vrot.slane %v358, 2
      %v451 = vsel %vm430, %v449, %v450
      %v452 = vrot.slane %v359, 2
      %v453 = vrot.slane %v360, 2
      %v454 = vsel %vm430, %v452, %v453
      %455 = vrot.lane.b32.xlu0 %v433, 16
      %v456 = vpop.permute.xlu0 %455
      %457 = vrot.lane.b32.xlu0 %v436, 16
      %v458 = vpop.permute.xlu0 %457
      %459 = vrot.lane.b32.xlu0 %v439, 16
      %v460 = vpop.permute.xlu0 %459
      %461 = vrot.lane.b32.xlu0 %v442, 16
      %v462 = vpop.permute.xlu0 %461
      %463 = vrot.lane.b32.xlu0 %v445, 16
      %v464 = vpop.permute.xlu0 %463
      %465 = vrot.lane.b32.xlu0 %v448, 16
      %v466 = vpop.permute.xlu0 %465
      %467 = vrot.lane.b32.xlu0 %v451, 16
      %v468 = vpop.permute.xlu0 %467
      %469 = vrot.lane.b32.xlu0 %v454, 16
      %v470 = vpop.permute.xlu0 %469
      %480 = vrot.lane.b32.xlu0 %v347, 24
      %v481 = vpop.permute.xlu0 %480
      %482 = vrot.lane.b32.xlu0 %v349, 24
      %v483 = vpop.permute.xlu0 %482
      %484 = vrot.lane.b32.xlu0 %v351, 24
      %v485 = vpop.permute.xlu0 %484
      %486 = vrot.lane.b32.xlu0 %v353, 24
      %v487 = vpop.permute.xlu0 %486
      %488 = vrot.lane.b32.xlu0 %v355, 24
      %v489 = vpop.permute.xlu0 %488
      %490 = vrot.lane.b32.xlu0 %v357, 24
      %v491 = vpop.permute.xlu0 %490
      %492 = vrot.lane.b32.xlu0 %v359, 24
      %v493 = vpop.permute.xlu0 %492
      %494 = vrot.lane.b32.xlu0 %v361, 24
      %v495 = vpop.permute.xlu0 %494
      %v505 = vrot.slane %v361, 1
      %v506 = vrot.slane %v362, 1
      %v507 = vsel %vm381, %v505, %v506
      %508 = vrot.lane.b32.xlu0 %v387, 32
      %v509 = vpop.permute.xlu0 %508
      %510 = vrot.lane.b32.xlu0 %v390, 32
      %v511 = vpop.permute.xlu0 %510
      %512 = vrot.lane.b32.xlu0 %v393, 32
      %v513 = vpop.permute.xlu0 %512
      %514 = vrot.lane.b32.xlu0 %v396, 32
      %v515 = vpop.permute.xlu0 %514
      %516 = vrot.lane.b32.xlu0 %v399, 32
      %v517 = vpop.permute.xlu0 %516
      %518 = vrot.lane.b32.xlu0 %v402, 32
      %v519 = vpop.permute.xlu0 %518
      %520 = vrot.lane.b32.xlu0 %v405, 32
      %v521 = vpop.permute.xlu0 %520
      %522 = vrot.lane.b32.xlu0 %v507, 32
      %v523 = vpop.permute.xlu0 %522
      %v532 = vrot.slane %v361, 2
      %v533 = vrot.slane %v362, 2
      %v534 = vsel %vm430, %v532, %v533
      %535 = vrot.lane.b32.xlu0 %v436, 40
      %v536 = vpop.permute.xlu0 %535
      %537 = vrot.lane.b32.xlu0 %v439, 40
      %v538 = vpop.permute.xlu0 %537
      %539 = vrot.lane.b32.xlu0 %v442, 40
      %v540 = vpop.permute.xlu0 %539
      %541 = vrot.lane.b32.xlu0 %v445, 40
      %v542 = vpop.permute.xlu0 %541
      %543 = vrot.lane.b32.xlu0 %v448, 40
      %v544 = vpop.permute.xlu0 %543
      %545 = vrot.lane.b32.xlu0 %v451, 40
      %v546 = vpop.permute.xlu0 %545
      %547 = vrot.lane.b32.xlu0 %v454, 40
      %v548 = vpop.permute.xlu0 %547
      %549 = vrot.lane.b32.xlu0 %v534, 40
      %v550 = vpop.permute.xlu0 %549
      %560 = vrot.lane.b32.xlu0 %v349, 48
      %v561 = vpop.permute.xlu0 %560
      %562 = vrot.lane.b32.xlu0 %v351, 48
      %v563 = vpop.permute.xlu0 %562
      %564 = vrot.lane.b32.xlu0 %v353, 48
      %v565 = vpop.permute.xlu0 %564
      %566 = vrot.lane.b32.xlu0 %v355, 48
      %v567 = vpop.permute.xlu0 %566
      %568 = vrot.lane.b32.xlu0 %v357, 48
      %v569 = vpop.permute.xlu0 %568
      %570 = vrot.lane.b32.xlu0 %v359, 48
      %v571 = vpop.permute.xlu0 %570
      %572 = vrot.lane.b32.xlu0 %v361, 48
      %v573 = vpop.permute.xlu0 %572
      %574 = vrot.lane.b32.xlu0 %v363, 48
      %v575 = vpop.permute.xlu0 %574
      %v585 = vrot.slane %v363, 1
      %v586 = vrot.slane %v364, 1
      %v587 = vsel %vm381, %v585, %v586
      %588 = vrot.lane.b32.xlu0 %v390, 56
      %v589 = vpop.permute.xlu0 %588
      %590 = vrot.lane.b32.xlu0 %v393, 56
      %v591 = vpop.permute.xlu0 %590
      %592 = vrot.lane.b32.xlu0 %v396, 56
      %v593 = vpop.permute.xlu0 %592
      %594 = vrot.lane.b32.xlu0 %v399, 56
      %v595 = vpop.permute.xlu0 %594
      %596 = vrot.lane.b32.xlu0 %v402, 56
      %v597 = vpop.permute.xlu0 %596
      %598 = vrot.lane.b32.xlu0 %v405, 56
      %v599 = vpop.permute.xlu0 %598
      %600 = vrot.lane.b32.xlu0 %v507, 56
      %v601 = vpop.permute.xlu0 %600
      %602 = vrot.lane.b32.xlu0 %v587, 56
      %v603 = vpop.permute.xlu0 %602
      %v612 = vrot.slane %v363, 2
      %v613 = vrot.slane %v364, 2
      %v614 = vsel %vm430, %v612, %v613
      %615 = vrot.lane.b32.xlu0 %v439, 64
      %v616 = vpop.permute.xlu0 %615
      %617 = vrot.lane.b32.xlu0 %v442, 64
      %v618 = vpop.permute.xlu0 %617
      %619 = vrot.lane.b32.xlu0 %v445, 64
      %v620 = vpop.permute.xlu0 %619
      %621 = vrot.lane.b32.xlu0 %v448, 64
      %v622 = vpop.permute.xlu0 %621
      %623 = vrot.lane.b32.xlu0 %v451, 64
      %v624 = vpop.permute.xlu0 %623
      %625 = vrot.lane.b32.xlu0 %v454, 64
      %v626 = vpop.permute.xlu0 %625
      %627 = vrot.lane.b32.xlu0 %v534, 64
      %v628 = vpop.permute.xlu0 %627
      %629 = vrot.lane.b32.xlu0 %v614, 64
      %v630 = vpop.permute.xlu0 %629
      %vm639 = vcmask 64512
      %v640 = vsel %vm639, %v345, %v407
      %v641 = vsel %vm639, %v347, %v409
      %v642 = vsel %vm639, %v349, %v411
      %v643 = vsel %vm639, %v351, %v413
      %v644 = vsel %vm639, %v353, %v415
      %v645 = vsel %vm639, %v355, %v417
      %v646 = vsel %vm639, %v357, %v419
      %v647 = vsel %vm639, %v359, %v421
      %vm648 = vcmask 130048
      %v649 = vsel %vm648, %v640, %v456
      %v650 = vsel %vm648, %v641, %v458
      %v651 = vsel %vm648, %v642, %v460
      %v652 = vsel %vm648, %v643, %v462
      %v653 = vsel %vm648, %v644, %v464
      %v654 = vsel %vm648, %v645, %v466
      %v655 = vsel %vm648, %v646, %v468
      %v656 = vsel %vm648, %v647, %v470
      %vm657 = vcmask 195584
      %v658 = vsel %vm657, %v649, %v481
      %v659 = vsel %vm657, %v650, %v483
      %v660 = vsel %vm657, %v651, %v485
      %v661 = vsel %vm657, %v652, %v487
      %v662 = vsel %vm657, %v653, %v489
      %v663 = vsel %vm657, %v654, %v491
      %v664 = vsel %vm657, %v655, %v493
      %v665 = vsel %vm657, %v656, %v495
      %vm666 = vcmask 261120
      %v667 = vsel %vm666, %v658, %v509
      %v668 = vsel %vm666, %v659, %v511
      %v669 = vsel %vm666, %v660, %v513
      %v670 = vsel %vm666, %v661, %v515
      %v671 = vsel %vm666, %v662, %v517
      %v672 = vsel %vm666, %v663, %v519
      %v673 = vsel %vm666, %v664, %v521
      %v674 = vsel %vm666, %v665, %v523
      %vm675 = vcmask 326656
      %v676 = vsel %vm675, %v667, %v536
      %v677 = vsel %vm675, %v668, %v538
      %v678 = vsel %vm675, %v669, %v540
      %v679 = vsel %vm675, %v670, %v542
      %v680 = vsel %vm675, %v671, %v544
      %v681 = vsel %vm675, %v672, %v546
      %v682 = vsel %vm675, %v673, %v548
      %v683 = vsel %vm675, %v674, %v550
      %vm684 = vcmask 392192
      %v685 = vsel %vm684, %v676, %v561
      %v686 = vsel %vm684, %v677, %v563
      %v687 = vsel %vm684, %v678, %v565
      %v688 = vsel %vm684, %v679, %v567
      %v689 = vsel %vm684, %v680, %v569
      %v690 = vsel %vm684, %v681, %v571
      %v691 = vsel %vm684, %v682, %v573
      %v692 = vsel %vm684, %v683, %v575
      %vm693 = vcmask 457728
      %v694 = vsel %vm693, %v685, %v589
      %v695 = vsel %vm693, %v686, %v591
      %v696 = vsel %vm693, %v687, %v593
      %v697 = vsel %vm693, %v688, %v595
      %v698 = vsel %vm693, %v689, %v597
      %v699 = vsel %vm693, %v690, %v599
      %v700 = vsel %vm693, %v691, %v601
      %v701 = vsel %vm693, %v692, %v603
      %vm702 = vcmask 523264
      %v703 = vsel %vm702, %v694, %v616
      %v704 = vsel %vm702, %v695, %v618
      %v705 = vsel %vm702, %v696, %v620
      %v706 = vsel %vm702, %v697, %v622
      %v707 = vsel %vm702, %v698, %v624
      %v708 = vsel %vm702, %v699, %v626
      %v709 = vsel %vm702, %v700, %v628
      %v710 = vsel %vm702, %v701, %v630
      %v711 = vld [vmem:[%s1] sm:$0xff]
      %v712 = vld [vmem:[%s1 + $0x8] sm:$0xff]
      %v713 = vld [vmem:[%s1 + $0x10] sm:$0xff]
      %v714 = vld [vmem:[%s1 + $0x18] sm:$0xff]
      %v715 = vld [vmem:[%s1 + $0x20] sm:$0xff]
      %v716 = vld [vmem:[%s1 + $0x28] sm:$0xff]
      %v717 = vld [vmem:[%s1 + $0x30] sm:$0xff]
      %v718 = vld [vmem:[%s1 + $0x38] sm:$0xff]
      %v719 = vld [vmem:[%s1 + $0x40] sm:$0xff]
      %vm720 = vcmask 588800
      %v722 = vsel %vm720, %v703, 0
      %v725 = vsel %vm720, %v704, 0
      %v728 = vsel %vm720, %v705, 0
      %v731 = vsel %vm720, %v706, 0
      %v734 = vsel %vm720, %v707, 0
      %v737 = vsel %vm720, %v708, 0
      %v740 = vsel %vm720, %v709, 0
      %v743 = vsel %vm720, %v710, 0
      %745 = vmatprep.subr.mxu0 0.0
      %746 = vmatpush1.msra.mxu0 %v711
      %747 = vmatprep.subr.mxu0 0.0
      %748 = vmatpush1.msra.mxu0 %v712
      %749 = vmatprep.subr.mxu0 0.0
      %750 = vmatpush1.msra.mxu0 %v713
      %751 = vmatprep.subr.mxu0 0.0
      %752 = vmatpush1.msra.mxu0 %v714
      %753 = vmatprep.subr.mxu0 0.0
      %754 = vmatpush1.msra.mxu0 %v715
      %755 = vmatprep.subr.mxu0 0.0
      %756 = vmatpush1.msra.mxu0 %v716
      %757 = vmatprep.subr.mxu0 0.0
      %758 = vmatpush1.msra.mxu0 %v717
      %759 = vmatprep.subr.mxu0 0.0
      %760 = vmatpush1.msra.mxu0 %v718
      %761 = vmatprep.subr.mxu0 0.0
      %762 = vmatpush1.msra.mxu0 %v719
      %763 = vmatprep.subr.mxu0 0.0
      %764 = vmatpush1.msra.mxu0 0.0
      %765 = vmatprep.subr.mxu0 0.0
      %766 = vmatpush1.msra.mxu0 0.0
      %767 = vmatprep.subr.mxu0 0.0
      %768 = vmatpush1.msra.mxu0 0.0
      %769 = vmatprep.subr.mxu0 0.0
      %770 = vmatpush1.msra.mxu0 0.0
      %771 = vmatprep.subr.mxu0 0.0
      %772 = vmatpush1.msra.mxu0 0.0
      %773 = vmatprep.subr.mxu0 0.0
      %774 = vmatpush1.msra.mxu0 0.0
      %775 = vmatprep.subr.mxu0 0.0
      %776 = vmatpush1.msra.mxu0 0.0
      %777 = vmatprep.subr.mxu0 0.0
      %778 = vmatpush1.msra.mxu0 0.0
      %779 = vmatprep.subr.mxu0 0.0
      %780 = vmatpush1.msra.mxu0 0.0
      %781 = vmatprep.subr.mxu0 0.0
      %782 = vmatpush1.msra.mxu0 0.0
      %783 = vmatprep.subr.mxu0 0.0
      %784 = vmatpush1.msra.mxu0 0.0
      %785 = vmatprep.subr.mxu0 0.0
      %786 = vmatpush1.msra.mxu0 0.0
      %787 = vmatprep.subr.mxu0 0.0
      %788 = vmatpush1.msra.mxu0 0.0
      %789 = vmatprep.subr.mxu0 0.0
      %790 = vmatpush1.msra.mxu0 0.0
      %791 = vmatprep.subr.mxu0 0.0
      %792 = vmatpush1.msra.mxu0 0.0
      %793 = vmatprep.subr.mxu0 0.0
      %794 = vmatpush1.msra.mxu0 0.0
      %795 = vmatprep.subr.mxu0 0.0
      %796 = vmatpush1.msra.mxu0 0.0
      %797 = vmatprep.subr.mxu0 0.0
      %798 = vmatpush1.msra.mxu0 0.0
      %799 = vmatprep.subr.mxu0 0.0
      %800 = vmatpush1.msra.mxu0 0.0
      %801 = vmatprep.subr.mxu0 0.0
      %802 = vmatpush1.msra.mxu0 0.0
      %803 = vmatprep.subr.mxu0 0.0
      %804 = vmatpush1.msra.mxu0 0.0
      %805 = vmatprep.subr.mxu0 0.0
      %806 = vmatpush1.msra.mxu0 0.0
      %807 = vmatprep.subr.mxu0 0.0
      %808 = vmatpush1.msra.mxu0 0.0
      %809 = vmatprep.mubr.f32.mxu0 0.0
      %810 = vmatmul.mubr.f32.gmra.mrb[0].mxu0 %v722
      %v811 = vpop.f32.mrb[0].mxu0
      %v812 = vadd.f32 0.0, %v811
      %v813 = vpop.f32.mrb[0].mxu0
      %814 = vmatprep.mubr.f32.mxu0 0.0
      %815 = vmatmul.mubr.f32.gmra.mrb[0].mxu0 %v725
      %v816 = vpop.f32.mrb[0].mxu0
      %v817 = vadd.f32 0.0, %v816
      %v818 = vpop.f32.mrb[0].mxu0
      %819 = vmatprep.mubr.f32.mxu0 0.0
      %820 = vmatmul.mubr.f32.gmra.mrb[0].mxu0 %v728
      %v821 = vpop.f32.mrb[0].mxu0
      %v822 = vadd.f32 0.0, %v821
      %v823 = vpop.f32.mrb[0].mxu0
      %824 = vmatprep.mubr.f32.mxu0 0.0
      %825 = vmatmul.mubr.f32.gmra.mrb[0].mxu0 %v731
      %v826 = vpop.f32.mrb[0].mxu0
      %v827 = vadd.f32 0.0, %v826
      %v828 = vpop.f32.mrb[0].mxu0
      %829 = vmatprep.mubr.f32.mxu0 0.0
      %830 = vmatmul.mubr.f32.gmra.mrb[0].mxu0 %v734
      %v831 = vpop.f32.mrb[0].mxu0
      %v832 = vadd.f32 0.0, %v831
      %v833 = vpop.f32.mrb[0].mxu0
      %834 = vmatprep.mubr.f32.mxu0 0.0
      %835 = vmatmul.mubr.f32.gmra.mrb[0].mxu0 %v737
      %v836 = vpop.f32.mrb[0].mxu0
      %v837 = vadd.f32 0.0, %v836
      %v838 = vpop.f32.mrb[0].mxu0
      %839 = vmatprep.mubr.f32.mxu0 0.0
      %840 = vmatmul.mubr.f32.gmra.mrb[0].mxu0 %v740
      %v841 = vpop.f32.mrb[0].mxu0
      %v842 = vadd.f32 0.0, %v841
      %v843 = vpop.f32.mrb[0].mxu0
      %844 = vmatprep.mubr.f32.mxu0 0.0
      %845 = vmatmul.mubr.f32.gmra.mrb[0].mxu0 %v743
      %v846 = vpop.f32.mrb[0].mxu0
      %v847 = vadd.f32 0.0, %v846
      %v848 = vpop.f32.mrb[0].mxu0
      %849 = vdwg.mxu0
      %v850 = vsel %vm639, %v812, 0.0
      %v851 = vsel %vm639, %v817, 0.0
      %v852 = vadd.f32 %v850, %v851
      %v853 = vsel %vm639, %v822, 0.0
      %v854 = vadd.f32 %v852, %v853
      %v855 = vsel %vm639, %v827, 0.0
      %v856 = vadd.f32 %v854, %v855
      %v857 = vsel %vm639, %v832, 0.0
      %v858 = vadd.f32 %v856, %v857
      %v859 = vsel %vm639, %v837, 0.0
      %v860 = vadd.f32 %v858, %v859
      %v861 = vsel %vm639, %v842, 0.0
      %v862 = vadd.f32 %v860, %v861
      %v863 = vsel %vm639, %v847, 0.0
      %v864 = vadd.f32 %v862, %v863
      %v865 = vrot.slane %v864, 4
      %v866 = vadd.f32 %v864, %v865
      %v867 = vrot.slane %v866, 2
      %v868 = vadd.f32 %v866, %v867
      %v869 = vrot.slane %v868, 1
      %v870 = vadd.f32 %v868, %v869
      %vm871 = vcmask 57344
      %872 = vst.msk [vmem:[%s235] sm:$0x1] %vm871, %v870
      %v873 = vmul.f32 %v812, %v812
      %v874 = vmul.f32 %v817, %v817
      %v875 = vmul.f32 %v822, %v822
      %v876 = vmul.f32 %v827, %v827
      %v877 = vmul.f32 %v832, %v832
      %v878 = vmul.f32 %v837, %v837
      %v879 = vmul.f32 %v842, %v842
      %v880 = vmul.f32 %v847, %v847
      %v881 = vsel %vm639, %v873, 0.0
      %v882 = vsel %vm639, %v874, 0.0
      %v883 = vadd.f32 %v881, %v882
      %v884 = vsel %vm639, %v875, 0.0
      %v885 = vadd.f32 %v883, %v884
      %v886 = vsel %vm639, %v876, 0.0
      %v887 = vadd.f32 %v885, %v886
      %v888 = vsel %vm639, %v877, 0.0
      %v889 = vadd.f32 %v887, %v888
      %v890 = vsel %vm639, %v878, 0.0
      %v891 = vadd.f32 %v889, %v890
      %v892 = vsel %vm639, %v879, 0.0
      %v893 = vadd.f32 %v891, %v892
      %v894 = vsel %vm639, %v880, 0.0
      %v895 = vadd.f32 %v893, %v894
      %v896 = vrot.slane %v895, 4
      %v897 = vadd.f32 %v895, %v896
      %v898 = vrot.slane %v897, 2
      %v899 = vadd.f32 %v897, %v898
      %v900 = vrot.slane %v899, 1
      %v901 = vadd.f32 %v899, %v900
      %902 = vst.msk [vmem:[%s235 + $0x1] sm:$0x1] %vm871, %v901
      %903 = vst.msk [vmem:[%s231] sm:$0xff] %vm639, %v812
      %904 = vst.msk [vmem:[%s231 + $0x8] sm:$0xff] %vm639, %v817
      %905 = vst.msk [vmem:[%s231 + $0x10] sm:$0xff] %vm639, %v822
      %906 = vst.msk [vmem:[%s231 + $0x18] sm:$0xff] %vm639, %v827
      %907 = vst.msk [vmem:[%s231 + $0x20] sm:$0xff] %vm639, %v832
      %908 = vst.msk [vmem:[%s231 + $0x28] sm:$0xff] %vm639, %v837
      %909 = vst.msk [vmem:[%s231 + $0x30] sm:$0xff] %vm639, %v842
      %910 = vst.msk [vmem:[%s231 + $0x38] sm:$0xff] %vm639, %v847
      %p911 = scmp.lt.s32.totalorder %s17, 1
      %s912 = scalar_select %p911, %s17, 1
      %s913 = smul.addr %s912, 8
      %s914 = smul.addr %s913, 8
      %s915 = scalar_lea.vmem %s4, %s914
      %p916 = scmp.lt.s32.totalorder %s17, 1
      %s917 = scalar_select %p916, %s17, 1
      %s918 = smul.addr %s917, 2
      %s919 = scalar_lea.vmem %s5, %s918
      // Predicated region
      $region37: #{residual_block_forward.5} parent=35 // pred_check
        %p920 = pneg %p124
      $region38: #{residual_block_forward.5} parent=35 // pred_check_branch
        %922 = sbr.rel (%p920) target = $region40
      $region39: #{residual_block_forward.5} parent=35 // pred_region
        _
      $region40: #{residual_block_forward.5} parent=35 // pred_fallthru
        _
      // Predicated region
      $region41: #{residual_block_forward.5} parent=35 // pred_check
        %p923 = pneg %p150
      $region42: #{residual_block_forward.5} parent=35 // pred_check_branch
        %925 = sbr.rel (%p923) target = $region44
      $region43: #{residual_block_forward.5} parent=35 // pred_region
        _
      $region44: #{residual_block_forward.5} parent=35 // pred_fallthru
        _
    $region36: #{residual_block_forward.5} parent=5 // pred_fallthru
      _
    %p926 = scmp.le.s32.totalorder 2, %s12
    // Predicated region
    $region45: #{residual_block_forward.5} parent=5 // pred_check
      %p927 = pneg %p926
    $region46: #{residual_block_forward.5} parent=5 // pred_check_branch
      %929 = sbr.rel (%p927) target = $region48
    $region47: #{residual_block_forward.5} parent=5 // pred_region
      %s930 = ssub.s32 %s12, 2
      // Predicated region
      $region49: #{residual_block_forward.5} parent=47 // pred_check
        %p931 = pneg %p130
      $region50: #{residual_block_forward.5} parent=47 // pred_check_branch
        %933 = sbr.rel (%p931) target = $region52
      $region51: #{residual_block_forward.5} parent=47 // pred_region
        %p934 = scmp.lt.s32.totalorder %s18, 1
        %s935 = scalar_select %p934, %s18, 1
        %s936 = smul.addr %s935, 8
        %s937 = smul.addr %s936, 8
        %s938 = scalar_lea.vmem %s4, %s937
      $region52: #{residual_block_forward.5} parent=47 // pred_fallthru
        _
      // Predicated region
      $region53: #{residual_block_forward.5} parent=47 // pred_check
        %p939 = pneg %p156
      $region54: #{residual_block_forward.5} parent=47 // pred_check_branch
        %941 = sbr.rel (%p939) target = $region56
      $region55: #{residual_block_forward.5} parent=47 // pred_region
        %p942 = scmp.lt.s32.totalorder %s18, 1
        %s943 = scalar_select %p942, %s18, 1
        %s944 = smul.addr %s943, 2
        %s945 = scalar_lea.vmem %s5, %s944
      $region56: #{residual_block_forward.5} parent=47 // pred_fallthru
        _
    $region48: #{residual_block_forward.5} parent=5 // pred_fallthru
      _
  $region6: #{residual_block_forward.5} parent=0 // loop_footer
    %s16 = sadd.s32 1, %s12
  $region7: #{residual_block_forward.5} parent=0 // loop_footer_branch
    %11 = sbr.rel target = $region3
  $region8: #{residual_block_forward.5} parent=0 // loop_exit
    _

</llo_original>
